<compile_context>
chip_gen: v7x
topology: tpu7x:2x2x1
jax: 0.10.0
libtpu: 0.0.40
codegen_flags: <defaults>
</compile_context>

<pallas_src>
import jax
import jax.numpy as jnp
from jax.experimental import pallas as pl
from jax.experimental.pallas import tpu as pltpu


def _round_up(v, m):
    return ((v + m - 1) // m) * m


# ---------------------------------------------------------------------------
# Pallas kernel: tap-accumulated conv GEMM + folded-BN bias + ReLU epilogue
# ---------------------------------------------------------------------------
def _conv_bn_relu_kernel(t_ref, w_ref, b_ref, o_ref, acc_ref):
    """grid = (row_tiles, ky_taps); tap axis is last and 'arbitrary'.

    t_ref : (TM, K)        bf16  one ky tap, kx folded into K (K index = kx*Cin + c)
    w_ref : (KK, K, COUTP) bf16  resident (constant index_map), BN scale folded in
    b_ref : (1, COUTP)     f32   resident bias
    o_ref : (TM, COUTP)    bf16  lane-dense output tile
    acc   : (TM, COUTP)    f32   VMEM scratch accumulator
    """
    tap = pl.program_id(1)

    @pl.when(tap == 0)
    def _():
        acc_ref[...] = jnp.zeros_like(acc_ref)

    acc_ref[...] += jnp.dot(t_ref[...], w_ref[tap],
                            preferred_element_type=jnp.float32)

    @pl.when(tap == pl.num_programs(1) - 1)
    def _():
        o_ref[...] = jnp.maximum(acc_ref[...] + b_ref[...], 0.0).astype(o_ref.dtype)


# ---------------------------------------------------------------------------
# Tiling / VMEM budgeting
# ---------------------------------------------------------------------------
def _pick_tm(mp, k, kk, coutp):
    """Largest power-of-two row tile (<=2048) dividing mp that fits a modest
    VMEM budget; among fitting tiles prefer an even tile count (v7x megacore
    balance), else take the largest tile (v5e/v6e single TC: fewer steps)."""
    kp = _round_up(k, 128)

    def fits(tm):
        per_tile = (2 * tm * kp * 2        # double-buffered bf16 tap tiles (lane-padded)
                    + 2 * tm * coutp * 2   # double-buffered bf16 output tiles
                    + tm * coutp * 4)      # f32 accumulator scratch
        resident = kk * kp * coutp * 2 + coutp * 4
        return per_tile + resident <= 24 * 1024 * 1024

    cands = [t for t in (2048, 1024, 512, 256, 128) if mp % t == 0 and fits(t)]
    if not cands:
        return 128 if mp % 128 == 0 else mp
    for t in cands:
        if (mp // t) % 2 == 0:
            return t
    return cands[0]


def _vmem_limit_bytes(tm, k, kk, coutp):
    kp = _round_up(k, 128)
    need = (2 * tm * kp * 2 + 2 * tm * coutp * 2 + tm * coutp * 4
            + kk * kp * coutp * 2 + coutp * 4)
    # 2x headroom for compiler-internal scratch; capped well below v7x's 64 MiB.
    return int(min(32 * 1024 * 1024, max(16 * 1024 * 1024, 2 * need)))


# ---------------------------------------------------------------------------
# Conv driver: (KK, M, K) taps @ (KK, K, Cout) weights, bias+ReLU epilogue
# ---------------------------------------------------------------------------
def _tap_conv(taps, w_k, bias):
    """taps (KK,M,K) bf16, w_k (KK,K,Cout) f32, bias (Cout,) f32 -> (M,Cout) bf16."""
    kk, M, K = taps.shape
    cout = w_k.shape[-1]
    coutp = _round_up(cout, 128)            # lane-dense output stores
    Mp = _round_up(M, 128)
    if Mp != M:
        taps = jnp.pad(taps, ((0, 0), (0, Mp - M), (0, 0)))
    w_p = jnp.pad(w_k, ((0, 0), (0, 0), (0, coutp - cout))).astype(jnp.bfloat16)
    b_p = jnp.pad(bias, ((0, coutp - cout),)).reshape(1, coutp).astype(jnp.float32)

    tm = _pick_tm(Mp, K, kk, coutp)
    out = pl.pallas_call(
        _conv_bn_relu_kernel,
        out_shape=jax.ShapeDtypeStruct((Mp, coutp), jnp.bfloat16),
        grid=(Mp // tm, kk),
        in_specs=[
            pl.BlockSpec((None, tm, K), lambda i, t: (t, i, 0)),     # one ky tap/step
            pl.BlockSpec((kk, K, coutp), lambda i, t: (0, 0, 0)),    # resident weights
            pl.BlockSpec((1, coutp), lambda i, t: (0, 0)),           # resident bias
        ],
        out_specs=pl.BlockSpec((tm, coutp), lambda i, t: (i, 0)),
        scratch_shapes=[pltpu.VMEM((tm, coutp), jnp.float32)],
        compiler_params=pltpu.CompilerParams(
            dimension_semantics=("parallel", "arbitrary"),
            vmem_limit_bytes=_vmem_limit_bytes(tm, K, kk, coutp)),
    )(taps, w_p, b_p)
    return out[:M, :cout]


# ---------------------------------------------------------------------------
# Glue: kx-folded tap extraction, weight placement (BN folded), max pool
# ---------------------------------------------------------------------------
def _kx_folded_taps(x_nhwc, stride):
    """3x3 / pad=1 conv taps with kx folded into channels.

    Returns ((3, N*Ho*Wo, 3*C) bf16, Ho, Wo); tap[ky][:, kx*C + c] is the
    input value at spatial offset (ky-1, kx-1) for that output row."""
    N, H, W, C = x_nhwc.shape
    Ho = (H + 2 - 3) // stride + 1
    Wo = (W + 2 - 3) // stride + 1
    xp = jnp.pad(x_nhwc, ((0, 0), (1, 1), (1, 1), (0, 0)))
    taps = []
    for ky in range(3):
        rows = xp[:, ky:ky + stride * (Ho - 1) + 1:stride, :, :]        # (N,Ho,W+2,C)
        cols = [rows[:, :, kx:kx + stride * (Wo - 1) + 1:stride, :] for kx in range(3)]
        taps.append(jnp.concatenate(cols, axis=-1))                     # (N,Ho,Wo,3C)
    return jnp.stack(taps, axis=0).reshape(3, N * Ho * Wo, 3 * C), Ho, Wo


def _place_3x3(wfull, p, cin_off, ccat, col_off):
    """Place a 3x3 ConvBlock's (BN-folded) weights into the fused (3,3*ccat,Cout)."""
    w, scale = p["w"], p["scale"]
    co, ci = w.shape[0], w.shape[1]
    wt = jnp.transpose(w, (2, 3, 1, 0)) * scale[None, None, None, :]    # (3,3,ci,co)
    for kx in range(3):
        r0 = kx * ccat + cin_off
        wfull = wfull.at[:, r0:r0 + ci, col_off:col_off + co].set(wt[:, kx])
    return wfull


def _place_1x1(wfull, p, cin_off, ccat, col_off):
    """Place a 1x1 ConvBlock on the center tap (ky=1, kx=1) of the fused weight."""
    w, scale = p["w"], p["scale"]
    co, ci = w.shape[0], w.shape[1]
    wt = w[:, :, 0, 0].T * scale[None, :]                               # (ci, co)
    r0 = 1 * ccat + cin_off
    return wfull.at[1, r0:r0 + ci, col_off:col_off + co].set(wt)


def _max_pool_3x3_s2(x_nhwc):
    """3x3 stride-2 pad-1 max pool, left to XLA as fused strided-slice maxes."""
    N, H, W, C = x_nhwc.shape
    Ho = (H + 2 - 3) // 2 + 1
    Wo = (W + 2 - 3) // 2 + 1
    xp = jnp.pad(x_nhwc, ((0, 0), (1, 1), (1, 1), (0, 0)),
                 constant_values=-jnp.inf)
    cols = [xp[:, :, kx:kx + 2 * (Wo - 1) + 1:2, :] for kx in range(3)]
    rowmax = jnp.maximum(jnp.maximum(cols[0], cols[1]), cols[2])        # (N,H+2,Wo,C)
    rows = [rowmax[:, ky:ky + 2 * (Ho - 1) + 1:2, :, :] for ky in range(3)]
    return jnp.maximum(jnp.maximum(rows[0], rows[1]), rows[2])          # (N,Ho,Wo,C)


# ---------------------------------------------------------------------------
# Deterministic parameter initialization (synthetic weights, no checkpoints)
# ---------------------------------------------------------------------------
def init_conv_block_params(key, in_ch, out_ch, k):
    kw, kg, kb, km, kv = jax.random.split(key, 5)
    fan_in = in_ch * k * k
    w = jax.random.normal(kw, (out_ch, in_ch, k, k), jnp.float32) / jnp.sqrt(
        jnp.float32(fan_in))
    gamma = 1.0 + 0.1 * jax.random.normal(kg, (out_ch,), jnp.float32)
    beta = 0.1 * jax.random.normal(kb, (out_ch,), jnp.float32)
    running_mean = 0.1 * jax.random.normal(km, (out_ch,), jnp.float32)
    running_var = 1.0 + 0.1 * jnp.abs(jax.random.normal(kv, (out_ch,), jnp.float32))
    eps = 1e-5
    scale = gamma / jnp.sqrt(running_var + eps)     # fold BN (inference) into affine
    bias = beta - running_mean * scale
    return {"w": w, "scale": scale, "bias": bias}


def init_reduction_b(key, in_ch, out_ch):
    oc = out_ch - in_ch                              # matches `outCh -= inCh`
    c5, c4, c3 = oc // 5, oc // 4, oc // 3
    miss = abs(oc - 3 * (oc // 3))
    keys = jax.random.split(key, 7)
    return {
        "b0_0": init_conv_block_params(keys[0], in_ch, c5, 1),
        "b0_1": init_conv_block_params(keys[1], c5, c3, 3),
        "b1_0": init_conv_block_params(keys[2], in_ch, c5, 3),
        "b1_1": init_conv_block_params(keys[3], c5, c3, 3),
        "b2_0": init_conv_block_params(keys[4], in_ch, c5, 1),
        "b2_1": init_conv_block_params(keys[5], c5, c4, 3),
        "b2_2": init_conv_block_params(keys[6], c4, miss + c3, 3),
    }


# ---------------------------------------------------------------------------
# ReductionB forward (NCHW in, NCHW out — PyTorch semantics)
# ---------------------------------------------------------------------------
def reduction_b_forward(params, x_nchw):
    x = jnp.transpose(x_nchw, (0, 2, 3, 1)).astype(jnp.bfloat16)   # NHWC bf16
    N, H, W, Cin = x.shape

    # ---- Stage A: every conv reading x, fused into one tap-GEMM ------------
    # Output columns: [branch0 1x1 | branch2 1x1 | branch1 3x3]
    c00 = params["b0_0"]["w"].shape[0]
    c20 = params["b2_0"]["w"].shape[0]
    c10 = params["b1_0"]["w"].shape[0]
    coutA = c00 + c20 + c10
    wA = jnp.zeros((3, 3 * Cin, coutA), jnp.float32)
    wA = _place_1x1(wA, params["b0_0"], 0, Cin, 0)
    wA = _place_1x1(wA, params["b2_0"], 0, Cin, c00)
    wA = _place_3x3(wA, params["b1_0"], 0, Cin, c00 + c20)
    bA = jnp.concatenate([params["b0_0"]["bias"], params["b2_0"]["bias"],
                          params["b1_0"]["bias"]])
    tapsA, Ho1, Wo1 = _kx_folded_taps(x, stride=1)
    yA = _tap_conv(tapsA, wA, bA).reshape(N, Ho1, Wo1, coutA)
    x0 = yA[..., :c00]                    # branch0 after its 1x1
    x2in = yA[..., c00:c00 + c20]         # branch2 after its 1x1
    x1m = yA[..., c00 + c20:]             # branch1 after its first 3x3

    # ---- Stage B: branch2 middle 3x3 (depends on stage A) ------------------
    p21 = params["b2_1"]
    c21 = p21["w"].shape[0]
    wB = _place_3x3(jnp.zeros((3, 3 * c20, c21), jnp.float32), p21, 0, c20, 0)
    tapsB, _, _ = _kx_folded_taps(x2in, stride=1)
    x2m = _tap_conv(tapsB, wB, p21["bias"]).reshape(N, Ho1, Wo1, c21)

    # ---- Stage C: the three stride-2 3x3 convs as one block-diagonal GEMM ---
    # Branch outputs land contiguously, already in torch concat order (x0,x1,x2).
    xcat = jnp.concatenate([x0, x1m, x2m], axis=-1)        # (N,H,W, c00+c10+c21)
    ccat = c00 + c10 + c21
    p01, p11, p22 = params["b0_1"], params["b1_1"], params["b2_2"]
    co01, co11, co22 = p01["w"].shape[0], p11["w"].shape[0], p22["w"].shape[0]
    wC = jnp.zeros((3, 3 * ccat, co01 + co11 + co22), jnp.float32)
    wC = _place_3x3(wC, p01, 0, ccat, 0)
    wC = _place_3x3(wC, p11, c00, ccat, co01)
    wC = _place_3x3(wC, p22, c00 + c10, ccat, co01 + co11)
    bC = jnp.concatenate([p01["bias"], p11["bias"], p22["bias"]])
    tapsC, Ho2, Wo2 = _kx_folded_taps(xcat, stride=2)
    yC = _tap_conv(tapsC, wC, bC).reshape(N, Ho2, Wo2, co01 + co11 + co22)

    # ---- branchpool: XLA-fused 3x3/s2 max pool (no Pallas round-trip) -------
    xpool = _max_pool_3x3_s2(x)

    out = jnp.concatenate([yC, xpool], axis=-1)            # (N,Ho2,Wo2, Ctot) bf16
    # TODO(synk): if the consumer is channels-last, skip this transpose/upcast
    # and convert once at the model boundary.
    out = jnp.transpose(out, (0, 3, 1, 2))                 # back to NCHW
    return out.astype(jnp.float32)                         # match PyTorch dtype


if __name__ == "__main__":
    key = jax.random.PRNGKey(0)
    k_x, k_p = jax.random.split(key)
    in_ch, out_ch = 4, 16
    x = jax.random.normal(k_x, (2, in_ch, 16, 16), jnp.float32)  # NCHW
    params = init_reduction_b(k_p, in_ch, out_ch)
    out = jax.jit(reduction_b_forward)(params, x)
    jax.block_until_ready(out)
    # oc=12 -> each branch emits oc//3=4 (miss=0) channels + inCh=4 pooled = 16
    assert out.shape == (2, 16, 8, 8), out.shape
    print("KERNEL_OK")
</pallas_src>

<mosaic_0001>
module attributes {stable_mosaic.version = 11 : i64} {
  func.func @_conv_bn_relu_kernel(%arg0: i32, %arg1: i32, %arg2: memref<1x256x12xbf16, #tpu.memory_space<vmem>>, %arg3: memref<3x12x128xbf16, #tpu.memory_space<vmem>>, %arg4: memref<1x128xf32, #tpu.memory_space<vmem>>, %arg5: memref<256x128xbf16, #tpu.memory_space<vmem>>, %arg6: memref<256x128xf32, #tpu.memory_space<vmem>>) attributes {dimension_semantics = [#tpu.dimension_semantics<parallel>, #tpu.dimension_semantics<arbitrary>], iteration_bounds = array<i64: 2, 3>, scalar_prefetch = 0 : i64, scratch_operands = 1 : i64, tpu.core_type = #tpu.core_type<tc>, window_params = [{transform_indices = @transform_0, window_bounds = array<i64: 1, 256, 12>}, {pipeline_mode = #tpu.pipeline_mode<synchronous>, transform_indices = @transform_1, window_bounds = array<i64: 3, 12, 128>}, {pipeline_mode = #tpu.pipeline_mode<synchronous>, transform_indices = @transform_2, window_bounds = array<i64: 1, 128>}, {transform_indices = @transform_3, window_bounds = array<i64: 256, 128>}]} {
    %c0_i32 = arith.constant 0 : i32
    %0 = arith.cmpi eq, %arg1, %c0_i32 : i32
    %1 = arith.extui %0 : i1 to i32
    %c0_i32_0 = arith.constant 0 : i32
    %2 = arith.cmpi ne, %1, %c0_i32_0 : i32
    scf.if %2 {
      %cst_10 = arith.constant 0.000000e+00 : f32
      %15 = vector.broadcast %cst_10 : f32 to vector<256x128xf32>
      %c0_11 = arith.constant 0 : index
      %c0_12 = arith.constant 0 : index
      %16 = vector.load %arg6[%c0_11, %c0_12] : memref<256x128xf32, #tpu.memory_space<vmem>>, vector<256x128xf32>
      tpu.vector_store %arg6[%c0_11, %c0_12], %15 {strides = array<i32>} : memref<256x128xf32, #tpu.memory_space<vmem>>, vector<256x128xf32>,
    } else {
    }
    %c0 = arith.constant 0 : index
    %c0_1 = arith.constant 0 : index
    %3 = vector.load %arg6[%c0, %c0_1] : memref<256x128xf32, #tpu.memory_space<vmem>>, vector<256x128xf32>
    %c0_2 = arith.constant 0 : index
    %c0_3 = arith.constant 0 : index
    %c0_4 = arith.constant 0 : index
    %4 = vector.load %arg2[%c0_2, %c0_3, %c0_4] : memref<1x256x12xbf16, #tpu.memory_space<vmem>>, vector<1x256x12xbf16>
    %5 = vector.shape_cast %4 : vector<1x256x12xbf16> to vector<256x12xbf16>
    %6 = arith.index_cast %arg1 : i32 to index
    %c0_5 = arith.constant 0 : index
    %c0_6 = arith.constant 0 : index
    %7 = vector.load %arg3[%6, %c0_5, %c0_6] : memref<3x12x128xbf16, #tpu.memory_space<vmem>>, vector<1x12x128xbf16>
    %8 = vector.shape_cast %7 : vector<1x12x128xbf16> to vector<12x128xbf16>
    %cst = arith.constant dense<0.000000e+00> : vector<256x128xf32>
    %9 = tpu.matmul %5, %8, %cst {dimension_numbers = #tpu.dot_dimension_numbers<[1], [0], [0], [1], [0, 0, 1, 1], [], []>} : vector<256x12xbf16>, vector<12x128xbf16>, vector<256x128xf32> -> vector<256x128xf32>
    %10 = arith.addf %3, %9 : vector<256x128xf32>
    %c0_7 = arith.constant 0 : index
    %c0_8 = arith.constant 0 : index
    %11 = vector.load %arg6[%c0_7, %c0_8] : memref<256x128xf32, #tpu.memory_space<vmem>>, vector<256x128xf32>
    tpu.vector_store %arg6[%c0_7, %c0_8], %10 {strides = array<i32>} : memref<256x128xf32, #tpu.memory_space<vmem>>, vector<256x128xf32>,
    %c2_i32 = arith.constant 2 : i32
    %12 = arith.cmpi eq, %arg1, %c2_i32 : i32
    %13 = arith.extui %12 : i1 to i32
    %c0_i32_9 = arith.constant 0 : i32
    %14 = arith.cmpi ne, %13, %c0_i32_9 : i32
    scf.if %14 {
      %c0_10 = arith.constant 0 : index
      %c0_11 = arith.constant 0 : index
      %15 = vector.load %arg6[%c0_10, %c0_11] : memref<256x128xf32, #tpu.memory_space<vmem>>, vector<256x128xf32>
      %c0_12 = arith.constant 0 : index
      %c0_13 = arith.constant 0 : index
      %16 = vector.load %arg4[%c0_12, %c0_13] : memref<1x128xf32, #tpu.memory_space<vmem>>, vector<1x128xf32>
      %17 = vector.broadcast %16 : vector<1x128xf32> to vector<256x128xf32>
      %18 = arith.addf %15, %17 : vector<256x128xf32>
      %cst_14 = arith.constant 0.000000e+00 : f32
      %19 = vector.broadcast %cst_14 : f32 to vector<256x128xf32>
      %20 = arith.maximumf %18, %19 : vector<256x128xf32>
      %21 = arith.truncf %20 : vector<256x128xf32> to vector<256x128xbf16>
      %c0_15 = arith.constant 0 : index
      %c0_16 = arith.constant 0 : index
      %22 = vector.load %arg5[%c0_15, %c0_16] : memref<256x128xbf16, #tpu.memory_space<vmem>>, vector<256x128xbf16>
      tpu.vector_store %arg5[%c0_15, %c0_16], %21 {strides = array<i32>} : memref<256x128xbf16, #tpu.memory_space<vmem>>, vector<256x128xbf16>,
    } else {
    }
    return
  }
  func.func @transform_0(%arg0: i32, %arg1: i32) -> (i32, i32, i32) {
    %c0_i32 = arith.constant 0 : i32
    %c0_i32_0 = arith.constant 0 : i32
    return %arg1, %arg0, %c0_i32 : i32, i32, i32
  }
  func.func @transform_1(%arg0: i32, %arg1: i32) -> (i32, i32, i32) {
    %c0_i32 = arith.constant 0 : i32
    %c0_i32_0 = arith.constant 0 : i32
    %c0_i32_1 = arith.constant 0 : i32
    %c0_i32_2 = arith.constant 0 : i32
    return %c0_i32, %c0_i32_0, %c0_i32_1 : i32, i32, i32
  }
  func.func @transform_2(%arg0: i32, %arg1: i32) -> (i32, i32) {
    %c0_i32 = arith.constant 0 : i32
    %c0_i32_0 = arith.constant 0 : i32
    %c0_i32_1 = arith.constant 0 : i32
    return %c0_i32, %c0_i32_0 : i32, i32
  }
  func.func @transform_3(%arg0: i32, %arg1: i32) -> (i32, i32) {
    %c0_i32 = arith.constant 0 : i32
    %c0_i32_0 = arith.constant 0 : i32
    return %arg0, %c0_i32 : i32, i32
  }
}

module attributes {stable_mosaic.version = 11 : i64} {
  func.func @_conv_bn_relu_kernel(%arg0: i32, %arg1: i32, %arg2: memref<1x256x6xbf16, #tpu.memory_space<vmem>>, %arg3: memref<3x6x128xbf16, #tpu.memory_space<vmem>>, %arg4: memref<1x128xf32, #tpu.memory_space<vmem>>, %arg5: memref<256x128xbf16, #tpu.memory_space<vmem>>, %arg6: memref<256x128xf32, #tpu.memory_space<vmem>>) attributes {dimension_semantics = [#tpu.dimension_semantics<parallel>, #tpu.dimension_semantics<arbitrary>], iteration_bounds = array<i64: 2, 3>, scalar_prefetch = 0 : i64, scratch_operands = 1 : i64, tpu.core_type = #tpu.core_type<tc>, window_params = [{transform_indices = @transform_0, window_bounds = array<i64: 1, 256, 6>}, {pipeline_mode = #tpu.pipeline_mode<synchronous>, transform_indices = @transform_1, window_bounds = array<i64: 3, 6, 128>}, {pipeline_mode = #tpu.pipeline_mode<synchronous>, transform_indices = @transform_2, window_bounds = array<i64: 1, 128>}, {transform_indices = @transform_3, window_bounds = array<i64: 256, 128>}]} {
    %c0_i32 = arith.constant 0 : i32
    %0 = arith.cmpi eq, %arg1, %c0_i32 : i32
    %1 = arith.extui %0 : i1 to i32
    %c0_i32_0 = arith.constant 0 : i32
    %2 = arith.cmpi ne, %1, %c0_i32_0 : i32
    scf.if %2 {
      %cst_10 = arith.constant 0.000000e+00 : f32
      %15 = vector.broadcast %cst_10 : f32 to vector<256x128xf32>
      %c0_11 = arith.constant 0 : index
      %c0_12 = arith.constant 0 : index
      %16 = vector.load %arg6[%c0_11, %c0_12] : memref<256x128xf32, #tpu.memory_space<vmem>>, vector<256x128xf32>
      tpu.vector_store %arg6[%c0_11, %c0_12], %15 {strides = array<i32>} : memref<256x128xf32, #tpu.memory_space<vmem>>, vector<256x128xf32>,
    } else {
    }
    %c0 = arith.constant 0 : index
    %c0_1 = arith.constant 0 : index
    %3 = vector.load %arg6[%c0, %c0_1] : memref<256x128xf32, #tpu.memory_space<vmem>>, vector<256x128xf32>
    %c0_2 = arith.constant 0 : index
    %c0_3 = arith.constant 0 : index
    %c0_4 = arith.constant 0 : index
    %4 = vector.load %arg2[%c0_2, %c0_3, %c0_4] : memref<1x256x6xbf16, #tpu.memory_space<vmem>>, vector<1x256x6xbf16>
    %5 = vector.shape_cast %4 : vector<1x256x6xbf16> to vector<256x6xbf16>
    %6 = arith.index_cast %arg1 : i32 to index
    %c0_5 = arith.constant 0 : index
    %c0_6 = arith.constant 0 : index
    %7 = vector.load %arg3[%6, %c0_5, %c0_6] : memref<3x6x128xbf16, #tpu.memory_space<vmem>>, vector<1x6x128xbf16>
    %8 = vector.shape_cast %7 : vector<1x6x128xbf16> to vector<6x128xbf16>
    %cst = arith.constant dense<0.000000e+00> : vector<256x128xf32>
    %9 = tpu.matmul %5, %8, %cst {dimension_numbers = #tpu.dot_dimension_numbers<[1], [0], [0], [1], [0, 0, 1, 1], [], []>} : vector<256x6xbf16>, vector<6x128xbf16>, vector<256x128xf32> -> vector<256x128xf32>
    %10 = arith.addf %3, %9 : vector<256x128xf32>
    %c0_7 = arith.constant 0 : index
    %c0_8 = arith.constant 0 : index
    %11 = vector.load %arg6[%c0_7, %c0_8] : memref<256x128xf32, #tpu.memory_space<vmem>>, vector<256x128xf32>
    tpu.vector_store %arg6[%c0_7, %c0_8], %10 {strides = array<i32>} : memref<256x128xf32, #tpu.memory_space<vmem>>, vector<256x128xf32>,
    %c2_i32 = arith.constant 2 : i32
    %12 = arith.cmpi eq, %arg1, %c2_i32 : i32
    %13 = arith.extui %12 : i1 to i32
    %c0_i32_9 = arith.constant 0 : i32
    %14 = arith.cmpi ne, %13, %c0_i32_9 : i32
    scf.if %14 {
      %c0_10 = arith.constant 0 : index
      %c0_11 = arith.constant 0 : index
      %15 = vector.load %arg6[%c0_10, %c0_11] : memref<256x128xf32, #tpu.memory_space<vmem>>, vector<256x128xf32>
      %c0_12 = arith.constant 0 : index
      %c0_13 = arith.constant 0 : index
      %16 = vector.load %arg4[%c0_12, %c0_13] : memref<1x128xf32, #tpu.memory_space<vmem>>, vector<1x128xf32>
      %17 = vector.broadcast %16 : vector<1x128xf32> to vector<256x128xf32>
      %18 = arith.addf %15, %17 : vector<256x128xf32>
      %cst_14 = arith.constant 0.000000e+00 : f32
      %19 = vector.broadcast %cst_14 : f32 to vector<256x128xf32>
      %20 = arith.maximumf %18, %19 : vector<256x128xf32>
      %21 = arith.truncf %20 : vector<256x128xf32> to vector<256x128xbf16>
      %c0_15 = arith.constant 0 : index
      %c0_16 = arith.constant 0 : index
      %22 = vector.load %arg5[%c0_15, %c0_16] : memref<256x128xbf16, #tpu.memory_space<vmem>>, vector<256x128xbf16>
      tpu.vector_store %arg5[%c0_15, %c0_16], %21 {strides = array<i32>} : memref<256x128xbf16, #tpu.memory_space<vmem>>, vector<256x128xbf16>,
    } else {
    }
    return
  }
  func.func @transform_0(%arg0: i32, %arg1: i32) -> (i32, i32, i32) {
    %c0_i32 = arith.constant 0 : i32
    %c0_i32_0 = arith.constant 0 : i32
    return %arg1, %arg0, %c0_i32 : i32, i32, i32
  }
  func.func @transform_1(%arg0: i32, %arg1: i32) -> (i32, i32, i32) {
    %c0_i32 = arith.constant 0 : i32
    %c0_i32_0 = arith.constant 0 : i32
    %c0_i32_1 = arith.constant 0 : i32
    %c0_i32_2 = arith.constant 0 : i32
    return %c0_i32, %c0_i32_0, %c0_i32_1 : i32, i32, i32
  }
  func.func @transform_2(%arg0: i32, %arg1: i32) -> (i32, i32) {
    %c0_i32 = arith.constant 0 : i32
    %c0_i32_0 = arith.constant 0 : i32
    %c0_i32_1 = arith.constant 0 : i32
    return %c0_i32, %c0_i32_0 : i32, i32
  }
  func.func @transform_3(%arg0: i32, %arg1: i32) -> (i32, i32) {
    %c0_i32 = arith.constant 0 : i32
    %c0_i32_0 = arith.constant 0 : i32
    return %arg0, %c0_i32 : i32, i32
  }
}

module attributes {stable_mosaic.version = 11 : i64} {
  func.func @_conv_bn_relu_kernel(%arg0: i32, %arg1: i32, %arg2: memref<1x128x21xbf16, #tpu.memory_space<vmem>>, %arg3: memref<3x21x128xbf16, #tpu.memory_space<vmem>>, %arg4: memref<1x128xf32, #tpu.memory_space<vmem>>, %arg5: memref<128x128xbf16, #tpu.memory_space<vmem>>, %arg6: memref<128x128xf32, #tpu.memory_space<vmem>>) attributes {dimension_semantics = [#tpu.dimension_semantics<parallel>, #tpu.dimension_semantics<arbitrary>], iteration_bounds = array<i64: 1, 3>, scalar_prefetch = 0 : i64, scratch_operands = 1 : i64, tpu.core_type = #tpu.core_type<tc>, window_params = [{transform_indices = @transform_0, window_bounds = array<i64: 1, 128, 21>}, {pipeline_mode = #tpu.pipeline_mode<synchronous>, transform_indices = @transform_1, window_bounds = array<i64: 3, 21, 128>}, {pipeline_mode = #tpu.pipeline_mode<synchronous>, transform_indices = @transform_2, window_bounds = array<i64: 1, 128>}, {transform_indices = @transform_3, window_bounds = array<i64: 128, 128>}]} {
    %c0_i32 = arith.constant 0 : i32
    %0 = arith.cmpi eq, %arg1, %c0_i32 : i32
    %1 = arith.extui %0 : i1 to i32
    %c0_i32_0 = arith.constant 0 : i32
    %2 = arith.cmpi ne, %1, %c0_i32_0 : i32
    scf.if %2 {
      %cst_10 = arith.constant 0.000000e+00 : f32
      %15 = vector.broadcast %cst_10 : f32 to vector<128x128xf32>
      %c0_11 = arith.constant 0 : index
      %c0_12 = arith.constant 0 : index
      %16 = vector.load %arg6[%c0_11, %c0_12] : memref<128x128xf32, #tpu.memory_space<vmem>>, vector<128x128xf32>
      tpu.vector_store %arg6[%c0_11, %c0_12], %15 {strides = array<i32>} : memref<128x128xf32, #tpu.memory_space<vmem>>, vector<128x128xf32>,
    } else {
    }
    %c0 = arith.constant 0 : index
    %c0_1 = arith.constant 0 : index
    %3 = vector.load %arg6[%c0, %c0_1] : memref<128x128xf32, #tpu.memory_space<vmem>>, vector<128x128xf32>
    %c0_2 = arith.constant 0 : index
    %c0_3 = arith.constant 0 : index
    %c0_4 = arith.constant 0 : index
    %4 = vector.load %arg2[%c0_2, %c0_3, %c0_4] : memref<1x128x21xbf16, #tpu.memory_space<vmem>>, vector<1x128x21xbf16>
    %5 = vector.shape_cast %4 : vector<1x128x21xbf16> to vector<128x21xbf16>
    %6 = arith.index_cast %arg1 : i32 to index
    %c0_5 = arith.constant 0 : index
    %c0_6 = arith.constant 0 : index
    %7 = vector.load %arg3[%6, %c0_5, %c0_6] : memref<3x21x128xbf16, #tpu.memory_space<vmem>>, vector<1x21x128xbf16>
    %8 = vector.shape_cast %7 : vector<1x21x128xbf16> to vector<21x128xbf16>
    %cst = arith.constant dense<0.000000e+00> : vector<128x128xf32>
    %9 = tpu.matmul %5, %8, %cst {dimension_numbers = #tpu.dot_dimension_numbers<[1], [0], [0], [1], [0, 0, 1, 1], [], []>} : vector<128x21xbf16>, vector<21x128xbf16>, vector<128x128xf32> -> vector<128x128xf32>
    %10 = arith.addf %3, %9 : vector<128x128xf32>
    %c0_7 = arith.constant 0 : index
    %c0_8 = arith.constant 0 : index
    %11 = vector.load %arg6[%c0_7, %c0_8] : memref<128x128xf32, #tpu.memory_space<vmem>>, vector<128x128xf32>
    tpu.vector_store %arg6[%c0_7, %c0_8], %10 {strides = array<i32>} : memref<128x128xf32, #tpu.memory_space<vmem>>, vector<128x128xf32>,
    %c2_i32 = arith.constant 2 : i32
    %12 = arith.cmpi eq, %arg1, %c2_i32 : i32
    %13 = arith.extui %12 : i1 to i32
    %c0_i32_9 = arith.constant 0 : i32
    %14 = arith.cmpi ne, %13, %c0_i32_9 : i32
    scf.if %14 {
      %c0_10 = arith.constant 0 : index
      %c0_11 = arith.constant 0 : index
      %15 = vector.load %arg6[%c0_10, %c0_11] : memref<128x128xf32, #tpu.memory_space<vmem>>, vector<128x128xf32>
      %c0_12 = arith.constant 0 : index
      %c0_13 = arith.constant 0 : index
      %16 = vector.load %arg4[%c0_12, %c0_13] : memref<1x128xf32, #tpu.memory_space<vmem>>, vector<1x128xf32>
      %17 = vector.broadcast %16 : vector<1x128xf32> to vector<128x128xf32>
      %18 = arith.addf %15, %17 : vector<128x128xf32>
      %cst_14 = arith.constant 0.000000e+00 : f32
      %19 = vector.broadcast %cst_14 : f32 to vector<128x128xf32>
      %20 = arith.maximumf %18, %19 : vector<128x128xf32>
      %21 = arith.truncf %20 : vector<128x128xf32> to vector<128x128xbf16>
      %c0_15 = arith.constant 0 : index
      %c0_16 = arith.constant 0 : index
      %22 = vector.load %arg5[%c0_15, %c0_16] : memref<128x128xbf16, #tpu.memory_space<vmem>>, vector<128x128xbf16>
      tpu.vector_store %arg5[%c0_15, %c0_16], %21 {strides = array<i32>} : memref<128x128xbf16, #tpu.memory_space<vmem>>, vector<128x128xbf16>,
    } else {
    }
    return
  }
  func.func @transform_0(%arg0: i32, %arg1: i32) -> (i32, i32, i32) {
    %c0_i32 = arith.constant 0 : i32
    %c0_i32_0 = arith.constant 0 : i32
    return %arg1, %arg0, %c0_i32 : i32, i32, i32
  }
  func.func @transform_1(%arg0: i32, %arg1: i32) -> (i32, i32, i32) {
    %c0_i32 = arith.constant 0 : i32
    %c0_i32_0 = arith.constant 0 : i32
    %c0_i32_1 = arith.constant 0 : i32
    %c0_i32_2 = arith.constant 0 : i32
    return %c0_i32, %c0_i32_0, %c0_i32_1 : i32, i32, i32
  }
  func.func @transform_2(%arg0: i32, %arg1: i32) -> (i32, i32) {
    %c0_i32 = arith.constant 0 : i32
    %c0_i32_0 = arith.constant 0 : i32
    %c0_i32_1 = arith.constant 0 : i32
    return %c0_i32, %c0_i32_0 : i32, i32
  }
  func.func @transform_3(%arg0: i32, %arg1: i32) -> (i32, i32) {
    %c0_i32 = arith.constant 0 : i32
    %c0_i32_0 = arith.constant 0 : i32
    return %arg0, %c0_i32 : i32, i32
  }
}

</mosaic_0001>

<llo_original>
// kernel: reduction_b_forward.4
$region0: #{reduction_b_forward.4}
  #allocation0 [shape = 'u32[]', space=smem, size = 0x4, offset = 0x4, fixed_abs, tag = 'smem constant byte address 0x4 - core index']
  #allocation1 [shape = 'u32[144,128]{1,0:T(1,128)}', space=vmem, size = 0x12000, scoped, tag = 'internal scratch']
  #allocation2 [shape = 'f32[256,128]{1,0:T(8,128)}', space=vmem, size = 0x20000, scoped, tag = 'scratch operand']
  %s0 = inlined_call_operand.vmem [shape: bf16[3,512,6], index: 0, kind: input, shape index: {}]
  %s1 = inlined_call_operand.vmem [shape: bf16[3,6,128], index: 1, kind: input, shape index: {}]
  %s2 = inlined_call_operand.vmem [shape: f32[1,128], index: 2, kind: input, shape index: {}]
  %s3 = inlined_call_operand.vmem [shape: bf16[512,128], index: 3, kind: output, shape index: {}]
  %s4 = sld [smem:[#allocation0]]
  $region53: #{reduction_b_forward.4} parent=0
    _
  %s6 = ssub.s32 1, %s4
  %s7 = scalar_select 0, %s6, %s4
  loop: start=0, step=1, limit=8
  $region2: #{reduction_b_forward.4} parent=0 // loop_pre_header
    _
  $region3: #{reduction_b_forward.4} parent=0 // loop_header
    %s9 = sphi 0, %s13
    %p10 = scmp.ge.s32.totalorder %s9, 8
    %s16 = sphi 0, %s28
    %s17 = sphi 0, %s24
    %s18 = sphi 0, %s16
    %s19 = sphi 0, %s17
    %s20 = sphi 0, %s18
    %s21 = sphi 0, %s19
    %s33 = sphi 0, %s35
    %s36 = sphi 0, %s33
    %s37 = sphi 0, %s36
    %s53 = sphi 0, %s37
    %s57 = sphi 0, %s57
    %s59 = sphi 0, %s57
    %s60 = sphi 0, %s59
    %s74 = sphi 0, %s60
    %s78 = sphi 0, %s78
    %s80 = sphi 0, %s78
    %s81 = sphi 0, %s80
    %s95 = sphi 0, %s81
    %s101 = sphi 0, %s103
    %s104 = sphi 0, %s101
    %s105 = sphi 0, %s104
    %s121 = sphi 0, %s105
  $region4: #{reduction_b_forward.4} parent=0 // loop_header_branch
    %12 = sbr.rel (%p10) target = $region8
  $region5: #{reduction_b_forward.4} parent=0 // loop_body
    %s14 = ssub.s32 %s9, 1
    %s15 = ssub.s32 %s9, 2
    %s22 = sadd.s32 1, %s17
    %p23 = scmp.ge.s32.totalorder %s22, 3
    %s24 = scalar_select %p23, 0, %s22
    %s25 = sadd.s32 1, %s16
    %s26 = scalar_select %p23, %s25, %s16
    %p27 = scmp.ge.s32.totalorder %s26, 2
    %s28 = scalar_select %p27, 0, %s26
    %s29 = ssub.s32 %s17, %s24
    %s30 = ssub.s32 %s16, %s28
    %s31 = sor.u32 %s29, %s30
    %p32 = scmp.eq.s32.totalorder %s31, 0
    %s34 = sadd.s32 %s33, 1
    %s35 = scalar_select %p32, %s33, %s34
    %p38 = pneg %p32
    %p39 = scmp.eq.s32.totalorder %s9, 5
    %p40 = por %p38, %p39
    %p41 = scmp.ne.s32.totalorder %s33, %s36
    %p42 = scmp.eq.s32.totalorder %s9, 0
    %p43 = por %p41, %p42
    %p44 = scmp.ne.s32.totalorder %s33, %s36
    %p45 = scmp.eq.s32.totalorder %s14, 5
    %p46 = por %p44, %p45
    %p47 = scmp.ne.s32.totalorder %s36, %s37
    %p48 = scmp.eq.s32.totalorder %s14, 0
    %p49 = por %p47, %p48
    %p50 = scmp.ne.s32.totalorder %s36, %s37
    %p51 = scmp.eq.s32.totalorder %s15, 5
    %p52 = por %p50, %p51
    %p54 = scmp.ne.s32.totalorder %s37, %s53
    %p55 = scmp.eq.s32.totalorder %s15, 0
    %p56 = por %p54, %p55
    %s58 = sadd.s32 %s57, 1
    %p61 = scmp.eq.s32.totalorder %s9, 5
    %p62 = scmp.ne.s32.totalorder %s57, %s59
    %p63 = scmp.eq.s32.totalorder %s9, 0
    %p64 = por %p62, %p63
    %p65 = scmp.ne.s32.totalorder %s57, %s59
    %p66 = scmp.eq.s32.totalorder %s14, 5
    %p67 = por %p65, %p66
    %p68 = scmp.ne.s32.totalorder %s59, %s60
    %p69 = scmp.eq.s32.totalorder %s14, 0
    %p70 = por %p68, %p69
    %p71 = scmp.ne.s32.totalorder %s59, %s60
    %p72 = scmp.eq.s32.totalorder %s15, 5
    %p73 = por %p71, %p72
    %p75 = scmp.ne.s32.totalorder %s60, %s74
    %p76 = scmp.eq.s32.totalorder %s15, 0
    %p77 = por %p75, %p76
    %s79 = sadd.s32 %s78, 1
    %p82 = scmp.eq.s32.totalorder %s9, 5
    %p83 = scmp.ne.s32.totalorder %s78, %s80
    %p84 = scmp.eq.s32.totalorder %s9, 0
    %p85 = por %p83, %p84
    %p86 = scmp.ne.s32.totalorder %s78, %s80
    %p87 = scmp.eq.s32.totalorder %s14, 5
    %p88 = por %p86, %p87
    %p89 = scmp.ne.s32.totalorder %s80, %s81
    %p90 = scmp.eq.s32.totalorder %s14, 0
    %p91 = por %p89, %p90
    %p92 = scmp.ne.s32.totalorder %s80, %s81
    %p93 = scmp.eq.s32.totalorder %s15, 5
    %p94 = por %p92, %p93
    %p96 = scmp.ne.s32.totalorder %s81, %s95
    %p97 = scmp.eq.s32.totalorder %s15, 0
    %p98 = por %p96, %p97
    %s99 = ssub.s32 %s16, %s28
    %p100 = scmp.eq.s32.totalorder %s99, 0
    %s102 = sadd.s32 %s101, 1
    %s103 = scalar_select %p100, %s101, %s102
    %p106 = pneg %p100
    %p107 = scmp.eq.s32.totalorder %s9, 5
    %p108 = por %p106, %p107
    %p109 = scmp.ne.s32.totalorder %s101, %s104
    %p110 = scmp.eq.s32.totalorder %s9, 0
    %p111 = por %p109, %p110
    %p112 = scmp.ne.s32.totalorder %s101, %s104
    %p113 = scmp.eq.s32.totalorder %s14, 5
    %p114 = por %p112, %p113
    %p115 = scmp.ne.s32.totalorder %s104, %s105
    %p116 = scmp.eq.s32.totalorder %s14, 0
    %p117 = por %p115, %p116
    %p118 = scmp.ne.s32.totalorder %s104, %s105
    %p119 = scmp.eq.s32.totalorder %s15, 5
    %p120 = por %p118, %p119
    %p122 = scmp.ne.s32.totalorder %s105, %s121
    %p123 = scmp.eq.s32.totalorder %s15, 0
    %p124 = por %p122, %p123
    %p125 = scmp.le.s32.totalorder 1, %s9
    %p126 = scmp.lt.s32.totalorder %s9, 7
    %p127 = pnand %p125, %p126
    %p128 = pneg %p127
    // Predicated region
    $region9: #{reduction_b_forward.4} parent=5 // pred_check
      _
    $region10: #{reduction_b_forward.4} parent=5 // pred_check_branch
      %130 = sbr.rel (%p127) target = $region12
    $region11: #{reduction_b_forward.4} parent=5 // pred_region
      %s131 = ssub.s32 %s9, 1
      // Predicated region
      $region13: #{reduction_b_forward.4} parent=11 // pred_check
        %p132 = pneg %p70
      $region14: #{reduction_b_forward.4} parent=11 // pred_check_branch
        %134 = sbr.rel (%p132) target = $region16
      $region15: #{reduction_b_forward.4} parent=11 // pred_region
        _
      $region16: #{reduction_b_forward.4} parent=11 // pred_fallthru
        _
      // Predicated region
      $region17: #{reduction_b_forward.4} parent=11 // pred_check
        %p135 = pneg %p91
      $region18: #{reduction_b_forward.4} parent=11 // pred_check_branch
        %137 = sbr.rel (%p135) target = $region20
      $region19: #{reduction_b_forward.4} parent=11 // pred_region
        _
      $region20: #{reduction_b_forward.4} parent=11 // pred_fallthru
        _
    $region12: #{reduction_b_forward.4} parent=5 // pred_fallthru
      _
    %p138 = scmp.lt.s32.totalorder %s9, 6
    // Predicated region
    $region21: #{reduction_b_forward.4} parent=5 // pred_check
      %p139 = pneg %p138
    $region22: #{reduction_b_forward.4} parent=5 // pred_check_branch
      %141 = sbr.rel (%p139) target = $region24
    $region23: #{reduction_b_forward.4} parent=5 // pred_region
      // Predicated region
      $region25: #{reduction_b_forward.4} parent=23 // pred_check
        %p142 = pneg %p43
      $region26: #{reduction_b_forward.4} parent=23 // pred_check_branch
        %144 = sbr.rel (%p142) target = $region28
      $region27: #{reduction_b_forward.4} parent=23 // pred_region
        %s145 = smul.u32 32, %s16
        %p146 = scmp.lt.s32.totalorder %s17, 2
        %s147 = scalar_select %p146, %s17, 2
        %p148 = scmp.lt.s32.totalorder %s145, 63
        %s149 = scalar_select %p148, %s145, 63
        %s150 = smul.addr %s147, 64
        %s151 = sadd.s32 %s149, %s150
        %s152 = smul.addr %s151, 4
        %s153 = scalar_lea.vmem %s0, %s152
        %s154 = smul.u32 32, %s16
      $region28: #{reduction_b_forward.4} parent=23 // pred_fallthru
        _
    $region24: #{reduction_b_forward.4} parent=5 // pred_fallthru
      _
    %p155 = scmp.le.s32.totalorder 1, %s9
    %p156 = scmp.lt.s32.totalorder %s9, 7
    %p157 = pnand %p155, %p156
    %p158 = pneg %p157
    // Predicated region
    $region29: #{reduction_b_forward.4} parent=5 // pred_check
      _
    $region30: #{reduction_b_forward.4} parent=5 // pred_check_branch
      %160 = sbr.rel (%p157) target = $region32
    $region31: #{reduction_b_forward.4} parent=5 // pred_region
      %s161 = ssub.s32 %s9, 1
      %s162 = smul.u32 32, %s18
      %p163 = scmp.lt.s32.totalorder %s19, 2
      %s164 = scalar_select %p163, %s19, 2
      %p165 = scmp.lt.s32.totalorder %s162, 63
      %s166 = scalar_select %p165, %s162, 63
      %s167 = smul.addr %s164, 64
      %s168 = sadd.s32 %s166, %s167
      %s169 = smul.addr %s168, 4
      %s170 = scalar_lea.vmem %s0, %s169
      %p171 = pneg %p49
      %p172 = pneg %p46
      %p173 = pneg %p70
      %p174 = pneg %p67
      %p175 = pneg %p91
      %p176 = pneg %p88
      %p177 = pneg %p117
      %p178 = pneg %p114
      %s179 = smul.u32 32, %s18
      %p180 = scmp.lt.s32.totalorder %s179, 63
      %s181 = scalar_select %p180, %s179, 63
      %s182 = smul.addr %s181, 4
      %s183 = scalar_lea.vmem %s3, %s182
      %s184 = smul.u32 32, %s18
      %p185 = scmp.lt.s32.totalorder %s19, 2
      %s186 = scalar_select %p185, %s19, 2
      %p187 = scmp.lt.s32.totalorder %s184, 63
      %s188 = scalar_select %p187, %s184, 63
      %s189 = smul.addr %s186, 64
      %s190 = sadd.s32 %s188, %s189
      %s191 = smul.addr %s190, 4
      %s192 = scalar_lea.vmem %s0, %s191
      %s193 = smul.u32 32, %s18
      %s194 = smul.u32 32, %s18
      %p195 = scmp.lt.s32.totalorder %s194, 63
      %s196 = scalar_select %p195, %s194, 63
      %s197 = smul.addr %s196, 4
      %s198 = scalar_lea.vmem %s3, %s197
      %s199 = smul.u32 32, %s18
      %p201 = scmp.eq.s32.totalorder %s19, 0
      // Predicated region
      $region33: #{reduction_b_forward.4} parent=31 // pred_check
        %p202 = pneg %p201
      $region34: #{reduction_b_forward.4} parent=31 // pred_check_branch
        %204 = sbr.rel (%p202) target = $region36
      $region35: #{reduction_b_forward.4} parent=31 // pred_region
        %205 = vst [vmem:[#allocation2] sm:$0xff] 0.0
        %206 = vst [vmem:[#allocation2 + $0x8] sm:$0xff] 0.0
        %207 = vst [vmem:[#allocation2 + $0x10] sm:$0xff] 0.0
        %208 = vst [vmem:[#allocation2 + $0x18] sm:$0xff] 0.0
        %209 = vst [vmem:[#allocation2 + $0x20] sm:$0xff] 0.0
        %210 = vst [vmem:[#allocation2 + $0x28] sm:$0xff] 0.0
        %211 = vst [vmem:[#allocation2 + $0x30] sm:$0xff] 0.0
        %212 = vst [vmem:[#allocation2 + $0x38] sm:$0xff] 0.0
        %213 = vst [vmem:[#allocation2 + $0x40] sm:$0xff] 0.0
        %214 = vst [vmem:[#allocation2 + $0x48] sm:$0xff] 0.0
        %215 = vst [vmem:[#allocation2 + $0x50] sm:$0xff] 0.0
        %216 = vst [vmem:[#allocation2 + $0x58] sm:$0xff] 0.0
        %217 = vst [vmem:[#allocation2 + $0x60] sm:$0xff] 0.0
        %218 = vst [vmem:[#allocation2 + $0x68] sm:$0xff] 0.0
        %219 = vst [vmem:[#allocation2 + $0x70] sm:$0xff] 0.0
        %220 = vst [vmem:[#allocation2 + $0x78] sm:$0xff] 0.0
        %221 = vst [vmem:[#allocation2 + $0x80] sm:$0xff] 0.0
        %222 = vst [vmem:[#allocation2 + $0x88] sm:$0xff] 0.0
        %223 = vst [vmem:[#allocation2 + $0x90] sm:$0xff] 0.0
        %224 = vst [vmem:[#allocation2 + $0x98] sm:$0xff] 0.0
        %225 = vst [vmem:[#allocation2 + $0xa0] sm:$0xff] 0.0
        %226 = vst [vmem:[#allocation2 + $0xa8] sm:$0xff] 0.0
        %227 = vst [vmem:[#allocation2 + $0xb0] sm:$0xff] 0.0
        %228 = vst [vmem:[#allocation2 + $0xb8] sm:$0xff] 0.0
        %229 = vst [vmem:[#allocation2 + $0xc0] sm:$0xff] 0.0
        %230 = vst [vmem:[#allocation2 + $0xc8] sm:$0xff] 0.0
        %231 = vst [vmem:[#allocation2 + $0xd0] sm:$0xff] 0.0
        %232 = vst [vmem:[#allocation2 + $0xd8] sm:$0xff] 0.0
        %233 = vst [vmem:[#allocation2 + $0xe0] sm:$0xff] 0.0
        %234 = vst [vmem:[#allocation2 + $0xe8] sm:$0xff] 0.0
        %235 = vst [vmem:[#allocation2 + $0xf0] sm:$0xff] 0.0
        %236 = vst [vmem:[#allocation2 + $0xf8] sm:$0xff] 0.0
      $region36: #{reduction_b_forward.4} parent=31 // pred_fallthru
        _
      %v237 = vld [vmem:[#allocation2] sm:$0xff]
      %v238 = vld [vmem:[#allocation2 + $0x8] sm:$0xff]
      %v239 = vld [vmem:[#allocation2 + $0x10] sm:$0xff]
      %v240 = vld [vmem:[#allocation2 + $0x18] sm:$0xff]
      %v241 = vld [vmem:[#allocation2 + $0x20] sm:$0xff]
      %v242 = vld [vmem:[#allocation2 + $0x28] sm:$0xff]
      %v243 = vld [vmem:[#allocation2 + $0x30] sm:$0xff]
      %v244 = vld [vmem:[#allocation2 + $0x38] sm:$0xff]
      %v245 = vld [vmem:[#allocation2 + $0x40] sm:$0xff]
      %v246 = vld [vmem:[#allocation2 + $0x48] sm:$0xff]
      %v247 = vld [vmem:[#allocation2 + $0x50] sm:$0xff]
      %v248 = vld [vmem:[#allocation2 + $0x58] sm:$0xff]
      %v249 = vld [vmem:[#allocation2 + $0x60] sm:$0xff]
      %v250 = vld [vmem:[#allocation2 + $0x68] sm:$0xff]
      %v251 = vld [vmem:[#allocation2 + $0x70] sm:$0xff]
      %v252 = vld [vmem:[#allocation2 + $0x78] sm:$0xff]
      %v253 = vld [vmem:[#allocation2 + $0x80] sm:$0xff]
      %v254 = vld [vmem:[#allocation2 + $0x88] sm:$0xff]
      %v255 = vld [vmem:[#allocation2 + $0x90] sm:$0xff]
      %v256 = vld [vmem:[#allocation2 + $0x98] sm:$0xff]
      %v257 = vld [vmem:[#allocation2 + $0xa0] sm:$0xff]
      %v258 = vld [vmem:[#allocation2 + $0xa8] sm:$0xff]
      %v259 = vld [vmem:[#allocation2 + $0xb0] sm:$0xff]
      %v260 = vld [vmem:[#allocation2 + $0xb8] sm:$0xff]
      %v261 = vld [vmem:[#allocation2 + $0xc0] sm:$0xff]
      %v262 = vld [vmem:[#allocation2 + $0xc8] sm:$0xff]
      %v263 = vld [vmem:[#allocation2 + $0xd0] sm:$0xff]
      %v264 = vld [vmem:[#allocation2 + $0xd8] sm:$0xff]
      %v265 = vld [vmem:[#allocation2 + $0xe0] sm:$0xff]
      %v266 = vld [vmem:[#allocation2 + $0xe8] sm:$0xff]
      %v267 = vld [vmem:[#allocation2 + $0xf0] sm:$0xff]
      %v268 = vld [vmem:[#allocation2 + $0xf8] sm:$0xff]
      %v269 = vld [vmem:[%s192] sm:$0xf]
      %v270 = vld [vmem:[%s192 + $0x4] sm:$0xf]
      %v271 = vld [vmem:[%s192 + $0x8] sm:$0xf]
      %v272 = vld [vmem:[%s192 + $0xc] sm:$0xf]
      %v273 = vld [vmem:[%s192 + $0x10] sm:$0xf]
      %v274 = vld [vmem:[%s192 + $0x14] sm:$0xf]
      %v275 = vld [vmem:[%s192 + $0x18] sm:$0xf]
      %v276 = vld [vmem:[%s192 + $0x1c] sm:$0xf]
      %v277 = vld [vmem:[%s192 + $0x20] sm:$0xf]
      %v278 = vld [vmem:[%s192 + $0x24] sm:$0xf]
      %v279 = vld [vmem:[%s192 + $0x28] sm:$0xf]
      %v280 = vld [vmem:[%s192 + $0x2c] sm:$0xf]
      %v281 = vld [vmem:[%s192 + $0x30] sm:$0xf]
      %v282 = vld [vmem:[%s192 + $0x34] sm:$0xf]
      %v283 = vld [vmem:[%s192 + $0x38] sm:$0xf]
      %v284 = vld [vmem:[%s192 + $0x3c] sm:$0xf]
      %v285 = vld [vmem:[%s192 + $0x40] sm:$0xf]
      %v286 = vld [vmem:[%s192 + $0x44] sm:$0xf]
      %v287 = vld [vmem:[%s192 + $0x48] sm:$0xf]
      %v288 = vld [vmem:[%s192 + $0x4c] sm:$0xf]
      %v289 = vld [vmem:[%s192 + $0x50] sm:$0xf]
      %v290 = vld [vmem:[%s192 + $0x54] sm:$0xf]
      %v291 = vld [vmem:[%s192 + $0x58] sm:$0xf]
      %v292 = vld [vmem:[%s192 + $0x5c] sm:$0xf]
      %v293 = vld [vmem:[%s192 + $0x60] sm:$0xf]
      %v294 = vld [vmem:[%s192 + $0x64] sm:$0xf]
      %v295 = vld [vmem:[%s192 + $0x68] sm:$0xf]
      %v296 = vld [vmem:[%s192 + $0x6c] sm:$0xf]
      %v297 = vld [vmem:[%s192 + $0x70] sm:$0xf]
      %v298 = vld [vmem:[%s192 + $0x74] sm:$0xf]
      %v299 = vld [vmem:[%s192 + $0x78] sm:$0xf]
      %v300 = vld [vmem:[%s192 + $0x7c] sm:$0xf]
      %s301 = smul.addr %s19, 4
      %s302 = scalar_lea.vmem %s1, %s301
      %v303 = vld [vmem:[%s302] sm:$0x7]
      %v336 = vunpack.c.l.b16 %v269
      %v337 = vunpack.c.l.b16 %v270
      %v338 = vunpack.c.l.b16 %v271
      %v339 = vunpack.c.l.b16 %v272
      %v340 = vunpack.c.l.b16 %v273
      %v341 = vunpack.c.l.b16 %v274
      %v342 = vunpack.c.l.b16 %v275
      %v343 = vunpack.c.l.b16 %v276
      %v344 = vunpack.c.l.b16 %v277
      %v345 = vunpack.c.l.b16 %v278
      %v346 = vunpack.c.l.b16 %v279
      %v347 = vunpack.c.l.b16 %v280
      %v348 = vunpack.c.l.b16 %v281
      %v349 = vunpack.c.l.b16 %v282
      %v350 = vunpack.c.l.b16 %v283
      %v351 = vunpack.c.l.b16 %v284
      %v352 = vunpack.c.l.b16 %v285
      %v353 = vunpack.c.l.b16 %v286
      %v354 = vunpack.c.l.b16 %v287
      %v355 = vunpack.c.l.b16 %v288
      %v356 = vunpack.c.l.b16 %v289
      %v357 = vunpack.c.l.b16 %v290
      %v358 = vunpack.c.l.b16 %v291
      %v359 = vunpack.c.l.b16 %v292
      %v360 = vunpack.c.l.b16 %v293
      %v361 = vunpack.c.l.b16 %v294
      %v362 = vunpack.c.l.b16 %v295
      %v363 = vunpack.c.l.b16 %v296
      %v364 = vunpack.c.l.b16 %v297
      %v365 = vunpack.c.l.b16 %v298
      %v366 = vunpack.c.l.b16 %v299
      %v367 = vunpack.c.l.b16 %v300
      %v368 = vpack.c.b16 %v337, %v336
      %v369 = vpack.c.b16 %v339, %v338
      %v370 = vpack.c.b16 %v341, %v340
      %v371 = vpack.c.b16 %v343, %v342
      %v372 = vpack.c.b16 %v345, %v344
      %v373 = vpack.c.b16 %v347, %v346
      %v374 = vpack.c.b16 %v349, %v348
      %v375 = vpack.c.b16 %v351, %v350
      %v376 = vpack.c.b16 %v353, %v352
      %v377 = vpack.c.b16 %v355, %v354
      %v378 = vpack.c.b16 %v357, %v356
      %v379 = vpack.c.b16 %v359, %v358
      %v380 = vpack.c.b16 %v361, %v360
      %v381 = vpack.c.b16 %v363, %v362
      %v382 = vpack.c.b16 %v365, %v364
      %v383 = vpack.c.b16 %v367, %v366
      %vm384 = vcmask 48128
      %v386 = vsel %vm384, %v368, 0
      %v389 = vsel %vm384, %v369, 0
      %v392 = vsel %vm384, %v370, 0
      %v395 = vsel %vm384, %v371, 0
      %v398 = vsel %vm384, %v372, 0
      %v401 = vsel %vm384, %v373, 0
      %v404 = vsel %vm384, %v374, 0
      %v407 = vsel %vm384, %v375, 0
      %v410 = vsel %vm384, %v376, 0
      %v413 = vsel %vm384, %v377, 0
      %v416 = vsel %vm384, %v378, 0
      %v419 = vsel %vm384, %v379, 0
      %v422 = vsel %vm384, %v380, 0
      %v425 = vsel %vm384, %v381, 0
      %v428 = vsel %vm384, %v382, 0
      %v431 = vsel %vm384, %v383, 0
      %vm433 = vcmask 1042432
      %v435 = vsel %vm433, %v303, 0
      %437 = vmatprep.subr.bf16.mxu0 0
      %438 = vmatpush1.bf16.msra.mxu0 %v435
      %439 = vmatprep.subr.bf16.mxu0 0
      %440 = vmatpush1.bf16.msra.mxu0 0
      %441 = vmatprep.subr.bf16.mxu0 0
      %442 = vmatpush1.bf16.msra.mxu0 0
      %443 = vmatprep.subr.bf16.mxu0 0
      %444 = vmatpush1.bf16.msra.mxu0 0
      %445 = vmatprep.subr.bf16.mxu0 0
      %446 = vmatpush1.bf16.msra.mxu0 0
      %447 = vmatprep.subr.bf16.mxu0 0
      %448 = vmatpush1.bf16.msra.mxu0 0
      %449 = vmatprep.subr.bf16.mxu0 0
      %450 = vmatpush1.bf16.msra.mxu0 0
      %451 = vmatprep.subr.bf16.mxu0 0
      %452 = vmatpush1.bf16.msra.mxu0 0
      %453 = vmatprep.subr.bf16.mxu0 0
      %454 = vmatpush1.bf16.msra.mxu0 0
      %455 = vmatprep.subr.bf16.mxu0 0
      %456 = vmatpush1.bf16.msra.mxu0 0
      %457 = vmatprep.subr.bf16.mxu0 0
      %458 = vmatpush1.bf16.msra.mxu0 0
      %459 = vmatprep.subr.bf16.mxu0 0
      %460 = vmatpush1.bf16.msra.mxu0 0
      %461 = vmatprep.subr.bf16.mxu0 0
      %462 = vmatpush1.bf16.msra.mxu0 0
      %463 = vmatprep.subr.bf16.mxu0 0
      %464 = vmatpush1.bf16.msra.mxu0 0
      %465 = vmatprep.subr.bf16.mxu0 0
      %466 = vmatpush1.bf16.msra.mxu0 0
      %467 = vmatprep.subr.bf16.mxu0 0
      %468 = vmatpush1.bf16.msra.mxu0 0
      %469 = vmatprep.mubr.bf16.mxu0 0
      %470 = vmatmul.mubr.bf16.gmra.mrb[0].mxu0 %v386
      %v471 = vpop.f32.mrb[0].mxu0
      %v472 = vadd.f32 0.0, %v471
      %v473 = vpop.f32.mrb[0].mxu0
      %v474 = vpop.f32.mrb[0].mxu0
      %v475 = vadd.f32 0.0, %v474
      %v476 = vpop.f32.mrb[0].mxu0
      %477 = vmatprep.mubr.bf16.mxu0 0
      %478 = vmatmul.mubr.bf16.gmra.mrb[0].mxu0 %v389
      %v479 = vpop.f32.mrb[0].mxu0
      %v480 = vadd.f32 0.0, %v479
      %v481 = vpop.f32.mrb[0].mxu0
      %v482 = vpop.f32.mrb[0].mxu0
      %v483 = vadd.f32 0.0, %v482
      %v484 = vpop.f32.mrb[0].mxu0
      %485 = vmatprep.mubr.bf16.mxu0 0
      %486 = vmatmul.mubr.bf16.gmra.mrb[0].mxu0 %v392
      %v487 = vpop.f32.mrb[0].mxu0
      %v488 = vadd.f32 0.0, %v487
      %v489 = vpop.f32.mrb[0].mxu0
      %v490 = vpop.f32.mrb[0].mxu0
      %v491 = vadd.f32 0.0, %v490
      %v492 = vpop.f32.mrb[0].mxu0
      %493 = vmatprep.mubr.bf16.mxu0 0
      %494 = vmatmul.mubr.bf16.gmra.mrb[0].mxu0 %v395
      %v495 = vpop.f32.mrb[0].mxu0
      %v496 = vadd.f32 0.0, %v495
      %v497 = vpop.f32.mrb[0].mxu0
      %v498 = vpop.f32.mrb[0].mxu0
      %v499 = vadd.f32 0.0, %v498
      %v500 = vpop.f32.mrb[0].mxu0
      %501 = vmatprep.mubr.bf16.mxu0 0
      %502 = vmatmul.mubr.bf16.gmra.mrb[0].mxu0 %v398
      %v503 = vpop.f32.mrb[0].mxu0
      %v504 = vadd.f32 0.0, %v503
      %v505 = vpop.f32.mrb[0].mxu0
      %v506 = vpop.f32.mrb[0].mxu0
      %v507 = vadd.f32 0.0, %v506
      %v508 = vpop.f32.mrb[0].mxu0
      %509 = vmatprep.mubr.bf16.mxu0 0
      %510 = vmatmul.mubr.bf16.gmra.mrb[0].mxu0 %v401
      %v511 = vpop.f32.mrb[0].mxu0
      %v512 = vadd.f32 0.0, %v511
      %v513 = vpop.f32.mrb[0].mxu0
      %v514 = vpop.f32.mrb[0].mxu0
      %v515 = vadd.f32 0.0, %v514
      %v516 = vpop.f32.mrb[0].mxu0
      %517 = vmatprep.mubr.bf16.mxu0 0
      %518 = vmatmul.mubr.bf16.gmra.mrb[0].mxu0 %v404
      %v519 = vpop.f32.mrb[0].mxu0
      %v520 = vadd.f32 0.0, %v519
      %v521 = vpop.f32.mrb[0].mxu0
      %v522 = vpop.f32.mrb[0].mxu0
      %v523 = vadd.f32 0.0, %v522
      %v524 = vpop.f32.mrb[0].mxu0
      %525 = vmatprep.mubr.bf16.mxu0 0
      %526 = vmatmul.mubr.bf16.gmra.mrb[0].mxu0 %v407
      %v527 = vpop.f32.mrb[0].mxu0
      %v528 = vadd.f32 0.0, %v527
      %v529 = vpop.f32.mrb[0].mxu0
      %v530 = vpop.f32.mrb[0].mxu0
      %v531 = vadd.f32 0.0, %v530
      %v532 = vpop.f32.mrb[0].mxu0
      %533 = vmatprep.mubr.bf16.mxu0 0
      %534 = vmatmul.mubr.bf16.gmra.mrb[0].mxu0 %v410
      %v535 = vpop.f32.mrb[0].mxu0
      %v536 = vadd.f32 0.0, %v535
      %v537 = vpop.f32.mrb[0].mxu0
      %v538 = vpop.f32.mrb[0].mxu0
      %v539 = vadd.f32 0.0, %v538
      %v540 = vpop.f32.mrb[0].mxu0
      %541 = vmatprep.mubr.bf16.mxu0 0
      %542 = vmatmul.mubr.bf16.gmra.mrb[0].mxu0 %v413
      %v543 = vpop.f32.mrb[0].mxu0
      %v544 = vadd.f32 0.0, %v543
      %v545 = vpop.f32.mrb[0].mxu0
      %v546 = vpop.f32.mrb[0].mxu0
      %v547 = vadd.f32 0.0, %v546
      %v548 = vpop.f32.mrb[0].mxu0
      %549 = vmatprep.mubr.bf16.mxu0 0
      %550 = vmatmul.mubr.bf16.gmra.mrb[0].mxu0 %v416
      %v551 = vpop.f32.mrb[0].mxu0
      %v552 = vadd.f32 0.0, %v551
      %v553 = vpop.f32.mrb[0].mxu0
      %v554 = vpop.f32.mrb[0].mxu0
      %v555 = vadd.f32 0.0, %v554
      %v556 = vpop.f32.mrb[0].mxu0
      %557 = vmatprep.mubr.bf16.mxu0 0
      %558 = vmatmul.mubr.bf16.gmra.mrb[0].mxu0 %v419
      %v559 = vpop.f32.mrb[0].mxu0
      %v560 = vadd.f32 0.0, %v559
      %v561 = vpop.f32.mrb[0].mxu0
      %v562 = vpop.f32.mrb[0].mxu0
      %v563 = vadd.f32 0.0, %v562
      %v564 = vpop.f32.mrb[0].mxu0
      %565 = vmatprep.mubr.bf16.mxu0 0
      %566 = vmatmul.mubr.bf16.gmra.mrb[0].mxu0 %v422
      %v567 = vpop.f32.mrb[0].mxu0
      %v568 = vadd.f32 0.0, %v567
      %v569 = vpop.f32.mrb[0].mxu0
      %v570 = vpop.f32.mrb[0].mxu0
      %v571 = vadd.f32 0.0, %v570
      %v572 = vpop.f32.mrb[0].mxu0
      %573 = vmatprep.mubr.bf16.mxu0 0
      %574 = vmatmul.mubr.bf16.gmra.mrb[0].mxu0 %v425
      %v575 = vpop.f32.mrb[0].mxu0
      %v576 = vadd.f32 0.0, %v575
      %v577 = vpop.f32.mrb[0].mxu0
      %v578 = vpop.f32.mrb[0].mxu0
      %v579 = vadd.f32 0.0, %v578
      %v580 = vpop.f32.mrb[0].mxu0
      %581 = vmatprep.mubr.bf16.mxu0 0
      %582 = vmatmul.mubr.bf16.gmra.mrb[0].mxu0 %v428
      %v583 = vpop.f32.mrb[0].mxu0
      %v584 = vadd.f32 0.0, %v583
      %v585 = vpop.f32.mrb[0].mxu0
      %v586 = vpop.f32.mrb[0].mxu0
      %v587 = vadd.f32 0.0, %v586
      %v588 = vpop.f32.mrb[0].mxu0
      %589 = vmatprep.mubr.bf16.mxu0 0
      %590 = vmatmul.mubr.bf16.gmra.mrb[0].mxu0 %v431
      %v591 = vpop.f32.mrb[0].mxu0
      %v592 = vadd.f32 0.0, %v591
      %v593 = vpop.f32.mrb[0].mxu0
      %v594 = vpop.f32.mrb[0].mxu0
      %v595 = vadd.f32 0.0, %v594
      %v596 = vpop.f32.mrb[0].mxu0
      %597 = vdwg.mxu0
      %v598 = vadd.f32 %v237, %v472
      %v599 = vadd.f32 %v238, %v475
      %v600 = vadd.f32 %v239, %v480
      %v601 = vadd.f32 %v240, %v483
      %v602 = vadd.f32 %v241, %v488
      %v603 = vadd.f32 %v242, %v491
      %v604 = vadd.f32 %v243, %v496
      %v605 = vadd.f32 %v244, %v499
      %v606 = vadd.f32 %v245, %v504
      %v607 = vadd.f32 %v246, %v507
      %v608 = vadd.f32 %v247, %v512
      %v609 = vadd.f32 %v248, %v515
      %v610 = vadd.f32 %v249, %v520
      %v611 = vadd.f32 %v250, %v523
      %v612 = vadd.f32 %v251, %v528
      %v613 = vadd.f32 %v252, %v531
      %v614 = vadd.f32 %v253, %v536
      %v615 = vadd.f32 %v254, %v539
      %v616 = vadd.f32 %v255, %v544
      %v617 = vadd.f32 %v256, %v547
      %v618 = vadd.f32 %v257, %v552
      %v619 = vadd.f32 %v258, %v555
      %v620 = vadd.f32 %v259, %v560
      %v621 = vadd.f32 %v260, %v563
      %v622 = vadd.f32 %v261, %v568
      %v623 = vadd.f32 %v262, %v571
      %v624 = vadd.f32 %v263, %v576
      %v625 = vadd.f32 %v264, %v579
      %v626 = vadd.f32 %v265, %v584
      %v627 = vadd.f32 %v266, %v587
      %v628 = vadd.f32 %v267, %v592
      %v629 = vadd.f32 %v268, %v595
      %630 = vst [vmem:[#allocation2] sm:$0xff] %v598
      %631 = vst [vmem:[#allocation2 + $0x8] sm:$0xff] %v599
      %632 = vst [vmem:[#allocation2 + $0x10] sm:$0xff] %v600
      %633 = vst [vmem:[#allocation2 + $0x18] sm:$0xff] %v601
      %634 = vst [vmem:[#allocation2 + $0x20] sm:$0xff] %v602
      %635 = vst [vmem:[#allocation2 + $0x28] sm:$0xff] %v603
      %636 = vst [vmem:[#allocation2 + $0x30] sm:$0xff] %v604
      %637 = vst [vmem:[#allocation2 + $0x38] sm:$0xff] %v605
      %638 = vst [vmem:[#allocation2 + $0x40] sm:$0xff] %v606
      %639 = vst [vmem:[#allocation2 + $0x48] sm:$0xff] %v607
      %640 = vst [vmem:[#allocation2 + $0x50] sm:$0xff] %v608
      %641 = vst [vmem:[#allocation2 + $0x58] sm:$0xff] %v609
      %642 = vst [vmem:[#allocation2 + $0x60] sm:$0xff] %v610
      %643 = vst [vmem:[#allocation2 + $0x68] sm:$0xff] %v611
      %644 = vst [vmem:[#allocation2 + $0x70] sm:$0xff] %v612
      %645 = vst [vmem:[#allocation2 + $0x78] sm:$0xff] %v613
      %646 = vst [vmem:[#allocation2 + $0x80] sm:$0xff] %v614
      %647 = vst [vmem:[#allocation2 + $0x88] sm:$0xff] %v615
      %648 = vst [vmem:[#allocation2 + $0x90] sm:$0xff] %v616
      %649 = vst [vmem:[#allocation2 + $0x98] sm:$0xff] %v617
      %650 = vst [vmem:[#allocation2 + $0xa0] sm:$0xff] %v618
      %651 = vst [vmem:[#allocation2 + $0xa8] sm:$0xff] %v619
      %652 = vst [vmem:[#allocation2 + $0xb0] sm:$0xff] %v620
      %653 = vst [vmem:[#allocation2 + $0xb8] sm:$0xff] %v621
      %654 = vst [vmem:[#allocation2 + $0xc0] sm:$0xff] %v622
      %655 = vst [vmem:[#allocation2 + $0xc8] sm:$0xff] %v623
      %656 = vst [vmem:[#allocation2 + $0xd0] sm:$0xff] %v624
      %657 = vst [vmem:[#allocation2 + $0xd8] sm:$0xff] %v625
      %658 = vst [vmem:[#allocation2 + $0xe0] sm:$0xff] %v626
      %659 = vst [vmem:[#allocation2 + $0xe8] sm:$0xff] %v627
      %660 = vst [vmem:[#allocation2 + $0xf0] sm:$0xff] %v628
      %661 = vst [vmem:[#allocation2 + $0xf8] sm:$0xff] %v629
      %p662 = scmp.eq.s32.totalorder %s19, 2
      // Predicated region
      $region37: #{reduction_b_forward.4} parent=31 // pred_check
        %p663 = pneg %p662
      $region38: #{reduction_b_forward.4} parent=31 // pred_check_branch
        %665 = sbr.rel (%p663) target = $region40
      $region39: #{reduction_b_forward.4} parent=31 // pred_region
        %v666 = vld [vmem:[#allocation2] sm:$0xff]
        %v667 = vld [vmem:[#allocation2 + $0x8] sm:$0xff]
        %v668 = vld [vmem:[#allocation2 + $0x10] sm:$0xff]
        %v669 = vld [vmem:[#allocation2 + $0x18] sm:$0xff]
        %v670 = vld [vmem:[#allocation2 + $0x20] sm:$0xff]
        %v671 = vld [vmem:[#allocation2 + $0x28] sm:$0xff]
        %v672 = vld [vmem:[#allocation2 + $0x30] sm:$0xff]
        %v673 = vld [vmem:[#allocation2 + $0x38] sm:$0xff]
        %v674 = vld [vmem:[#allocation2 + $0x40] sm:$0xff]
        %v675 = vld [vmem:[#allocation2 + $0x48] sm:$0xff]
        %v676 = vld [vmem:[#allocation2 + $0x50] sm:$0xff]
        %v677 = vld [vmem:[#allocation2 + $0x58] sm:$0xff]
        %v678 = vld [vmem:[#allocation2 + $0x60] sm:$0xff]
        %v679 = vld [vmem:[#allocation2 + $0x68] sm:$0xff]
        %v680 = vld [vmem:[#allocation2 + $0x70] sm:$0xff]
        %v681 = vld [vmem:[#allocation2 + $0x78] sm:$0xff]
        %v682 = vld [vmem:[#allocation2 + $0x80] sm:$0xff]
        %v683 = vld [vmem:[#allocation2 + $0x88] sm:$0xff]
        %v684 = vld [vmem:[#allocation2 + $0x90] sm:$0xff]
        %v685 = vld [vmem:[#allocation2 + $0x98] sm:$0xff]
        %v686 = vld [vmem:[#allocation2 + $0xa0] sm:$0xff]
        %v687 = vld [vmem:[#allocation2 + $0xa8] sm:$0xff]
        %v688 = vld [vmem:[#allocation2 + $0xb0] sm:$0xff]
        %v689 = vld [vmem:[#allocation2 + $0xb8] sm:$0xff]
        %v690 = vld [vmem:[#allocation2 + $0xc0] sm:$0xff]
        %v691 = vld [vmem:[#allocation2 + $0xc8] sm:$0xff]
        %v692 = vld [vmem:[#allocation2 + $0xd0] sm:$0xff]
        %v693 = vld [vmem:[#allocation2 + $0xd8] sm:$0xff]
        %v694 = vld [vmem:[#allocation2 + $0xe0] sm:$0xff]
        %v695 = vld [vmem:[#allocation2 + $0xe8] sm:$0xff]
        %v696 = vld [vmem:[#allocation2 + $0xf0] sm:$0xff]
        %v697 = vld [vmem:[#allocation2 + $0xf8] sm:$0xff]
        %v698 = vld [vmem:[%s2] sm:$0x1]
        %v700 = vlaneseq
        %v701 = vshrl.u32 %v700, 7
        %v702 = vsub.s32 0, %v701
        %v703 = vrot.slane %v698, %v702
        %v705 = vadd.f32 %v666, %v703
        %v706 = vadd.f32 %v667, %v703
        %v707 = vadd.f32 %v668, %v703
        %v708 = vadd.f32 %v669, %v703
        %v709 = vadd.f32 %v670, %v703
        %v710 = vadd.f32 %v671, %v703
        %v711 = vadd.f32 %v672, %v703
        %v712 = vadd.f32 %v673, %v703
        %v713 = vadd.f32 %v674, %v703
        %v714 = vadd.f32 %v675, %v703
        %v715 = vadd.f32 %v676, %v703
        %v716 = vadd.f32 %v677, %v703
        %v717 = vadd.f32 %v678, %v703
        %v718 = vadd.f32 %v679, %v703
        %v719 = vadd.f32 %v680, %v703
        %v720 = vadd.f32 %v681, %v703
        %v721 = vadd.f32 %v682, %v703
        %v722 = vadd.f32 %v683, %v703
        %v723 = vadd.f32 %v684, %v703
        %v724 = vadd.f32 %v685, %v703
        %v725 = vadd.f32 %v686, %v703
        %v726 = vadd.f32 %v687, %v703
        %v727 = vadd.f32 %v688, %v703
        %v728 = vadd.f32 %v689, %v703
        %v729 = vadd.f32 %v690, %v703
        %v730 = vadd.f32 %v691, %v703
        %v731 = vadd.f32 %v692, %v703
        %v732 = vadd.f32 %v693, %v703
        %v733 = vadd.f32 %v694, %v703
        %v734 = vadd.f32 %v695, %v703
        %v735 = vadd.f32 %v696, %v703
        %v736 = vadd.f32 %v697, %v703
        %v737 = vmax.f32 %v705, 0.0
        %v738 = vmax.f32 %v706, 0.0
        %v739 = vmax.f32 %v707, 0.0
        %v740 = vmax.f32 %v708, 0.0
        %v741 = vmax.f32 %v709, 0.0
        %v742 = vmax.f32 %v710, 0.0
        %v743 = vmax.f32 %v711, 0.0
        %v744 = vmax.f32 %v712, 0.0
        %v745 = vmax.f32 %v713, 0.0
        %v746 = vmax.f32 %v714, 0.0
        %v747 = vmax.f32 %v715, 0.0
        %v748 = vmax.f32 %v716, 0.0
        %v749 = vmax.f32 %v717, 0.0
        %v750 = vmax.f32 %v718, 0.0
        %v751 = vmax.f32 %v719, 0.0
        %v752 = vmax.f32 %v720, 0.0
        %v753 = vmax.f32 %v721, 0.0
        %v754 = vmax.f32 %v722, 0.0
        %v755 = vmax.f32 %v723, 0.0
        %v756 = vmax.f32 %v724, 0.0
        %v757 = vmax.f32 %v725, 0.0
        %v758 = vmax.f32 %v726, 0.0
        %v759 = vmax.f32 %v727, 0.0
        %v760 = vmax.f32 %v728, 0.0
        %v761 = vmax.f32 %v729, 0.0
        %v762 = vmax.f32 %v730, 0.0
        %v763 = vmax.f32 %v731, 0.0
        %v764 = vmax.f32 %v732, 0.0
        %v765 = vmax.f32 %v733, 0.0
        %v766 = vmax.f32 %v734, 0.0
        %v767 = vmax.f32 %v735, 0.0
        %v768 = vmax.f32 %v736, 0.0
        %v769 = vpack.c.bf16 %v738, %v737
        %v770 = vpack.c.bf16 %v740, %v739
        %v771 = vpack.c.bf16 %v742, %v741
        %v772 = vpack.c.bf16 %v744, %v743
        %v773 = vpack.c.bf16 %v746, %v745
        %v774 = vpack.c.bf16 %v748, %v747
        %v775 = vpack.c.bf16 %v750, %v749
        %v776 = vpack.c.bf16 %v752, %v751
        %v777 = vpack.c.bf16 %v754, %v753
        %v778 = vpack.c.bf16 %v756, %v755
        %v779 = vpack.c.bf16 %v758, %v757
        %v780 = vpack.c.bf16 %v760, %v759
        %v781 = vpack.c.bf16 %v762, %v761
        %v782 = vpack.c.bf16 %v764, %v763
        %v783 = vpack.c.bf16 %v766, %v765
        %v784 = vpack.c.bf16 %v768, %v767
        %v801 = vunpack.c.l.b16 %v769
        %v802 = vunpack.c.h.b16 %v769
        %v803 = vunpack.c.l.b16 %v770
        %v804 = vunpack.c.h.b16 %v770
        %v805 = vunpack.c.l.b16 %v771
        %v806 = vunpack.c.h.b16 %v771
        %v807 = vunpack.c.l.b16 %v772
        %v808 = vunpack.c.h.b16 %v772
        %v809 = vunpack.c.l.b16 %v773
        %v810 = vunpack.c.h.b16 %v773
        %v811 = vunpack.c.l.b16 %v774
        %v812 = vunpack.c.h.b16 %v774
        %v813 = vunpack.c.l.b16 %v775
        %v814 = vunpack.c.h.b16 %v775
        %v815 = vunpack.c.l.b16 %v776
        %v816 = vunpack.c.h.b16 %v776
        %v817 = vunpack.c.l.b16 %v777
        %v818 = vunpack.c.h.b16 %v777
        %v819 = vunpack.c.l.b16 %v778
        %v820 = vunpack.c.h.b16 %v778
        %v821 = vunpack.c.l.b16 %v779
        %v822 = vunpack.c.h.b16 %v779
        %v823 = vunpack.c.l.b16 %v780
        %v824 = vunpack.c.h.b16 %v780
        %v825 = vunpack.c.l.b16 %v781
        %v826 = vunpack.c.h.b16 %v781
        %v827 = vunpack.c.l.b16 %v782
        %v828 = vunpack.c.h.b16 %v782
        %v829 = vunpack.c.l.b16 %v783
        %v830 = vunpack.c.h.b16 %v783
        %v831 = vunpack.c.l.b16 %v784
        %v832 = vunpack.c.h.b16 %v784
        %v833 = vpack.c.b16 %v801, %v801
        %v834 = vpack.c.b16 %v802, %v802
        %v835 = vpack.c.b16 %v803, %v803
        %v836 = vpack.c.b16 %v804, %v804
        %v837 = vpack.c.b16 %v805, %v805
        %v838 = vpack.c.b16 %v806, %v806
        %v839 = vpack.c.b16 %v807, %v807
        %v840 = vpack.c.b16 %v808, %v808
        %v841 = vpack.c.b16 %v809, %v809
        %v842 = vpack.c.b16 %v810, %v810
        %v843 = vpack.c.b16 %v811, %v811
        %v844 = vpack.c.b16 %v812, %v812
        %v845 = vpack.c.b16 %v813, %v813
        %v846 = vpack.c.b16 %v814, %v814
        %v847 = vpack.c.b16 %v815, %v815
        %v848 = vpack.c.b16 %v816, %v816
        %v849 = vpack.c.b16 %v817, %v817
        %v850 = vpack.c.b16 %v818, %v818
        %v851 = vpack.c.b16 %v819, %v819
        %v852 = vpack.c.b16 %v820, %v820
        %v853 = vpack.c.b16 %v821, %v821
        %v854 = vpack.c.b16 %v822, %v822
        %v855 = vpack.c.b16 %v823, %v823
        %v856 = vpack.c.b16 %v824, %v824
        %v857 = vpack.c.b16 %v825, %v825
        %v858 = vpack.c.b16 %v826, %v826
        %v859 = vpack.c.b16 %v827, %v827
        %v860 = vpack.c.b16 %v828, %v828
        %v861 = vpack.c.b16 %v829, %v829
        %v862 = vpack.c.b16 %v830, %v830
        %v863 = vpack.c.b16 %v831, %v831
        %v864 = vpack.c.b16 %v832, %v832
        %897 = vst [vmem:[%s198] sm:$0xf] %v833
        %898 = vst [vmem:[%s198 + $0x4] sm:$0xf] %v834
        %899 = vst [vmem:[%s198 + $0x8] sm:$0xf] %v835
        %900 = vst [vmem:[%s198 + $0xc] sm:$0xf] %v836
        %901 = vst [vmem:[%s198 + $0x10] sm:$0xf] %v837
        %902 = vst [vmem:[%s198 + $0x14] sm:$0xf] %v838
        %903 = vst [vmem:[%s198 + $0x18] sm:$0xf] %v839
        %904 = vst [vmem:[%s198 + $0x1c] sm:$0xf] %v840
        %905 = vst [vmem:[%s198 + $0x20] sm:$0xf] %v841
        %906 = vst [vmem:[%s198 + $0x24] sm:$0xf] %v842
        %907 = vst [vmem:[%s198 + $0x28] sm:$0xf] %v843
        %908 = vst [vmem:[%s198 + $0x2c] sm:$0xf] %v844
        %909 = vst [vmem:[%s198 + $0x30] sm:$0xf] %v845
        %910 = vst [vmem:[%s198 + $0x34] sm:$0xf] %v846
        %911 = vst [vmem:[%s198 + $0x38] sm:$0xf] %v847
        %912 = vst [vmem:[%s198 + $0x3c] sm:$0xf] %v848
        %913 = vst [vmem:[%s198 + $0x40] sm:$0xf] %v849
        %914 = vst [vmem:[%s198 + $0x44] sm:$0xf] %v850
        %915 = vst [vmem:[%s198 + $0x48] sm:$0xf] %v851
        %916 = vst [vmem:[%s198 + $0x4c] sm:$0xf] %v852
        %917 = vst [vmem:[%s198 + $0x50] sm:$0xf] %v853
        %918 = vst [vmem:[%s198 + $0x54] sm:$0xf] %v854
        %919 = vst [vmem:[%s198 + $0x58] sm:$0xf] %v855
        %920 = vst [vmem:[%s198 + $0x5c] sm:$0xf] %v856
        %921 = vst [vmem:[%s198 + $0x60] sm:$0xf] %v857
        %922 = vst [vmem:[%s198 + $0x64] sm:$0xf] %v858
        %923 = vst [vmem:[%s198 + $0x68] sm:$0xf] %v859
        %924 = vst [vmem:[%s198 + $0x6c] sm:$0xf] %v860
        %925 = vst [vmem:[%s198 + $0x70] sm:$0xf] %v861
        %926 = vst [vmem:[%s198 + $0x74] sm:$0xf] %v862
        %927 = vst [vmem:[%s198 + $0x78] sm:$0xf] %v863
        %928 = vst [vmem:[%s198 + $0x7c] sm:$0xf] %v864
      $region40: #{reduction_b_forward.4} parent=31 // pred_fallthru
        _
      %s929 = smul.u32 32, %s18
      %p930 = scmp.lt.s32.totalorder %s929, 63
      %s931 = scalar_select %p930, %s929, 63
      %s932 = smul.addr %s931, 4
      %s933 = scalar_lea.vmem %s3, %s932
      // Predicated region
      $region41: #{reduction_b_forward.4} parent=31 // pred_check
        %p934 = pneg %p114
      $region42: #{reduction_b_forward.4} parent=31 // pred_check_branch
        %936 = sbr.rel (%p934) target = $region44
      $region43: #{reduction_b_forward.4} parent=31 // pred_region
        %s937 = smul.u32 32, %s18
      $region44: #{reduction_b_forward.4} parent=31 // pred_fallthru
        _
    $region32: #{reduction_b_forward.4} parent=5 // pred_fallthru
      _
    %p938 = scmp.le.s32.totalorder 2, %s9
    // Predicated region
    $region45: #{reduction_b_forward.4} parent=5 // pred_check
      %p939 = pneg %p938
    $region46: #{reduction_b_forward.4} parent=5 // pred_check_branch
      %941 = sbr.rel (%p939) target = $region48
    $region47: #{reduction_b_forward.4} parent=5 // pred_region
      %s942 = ssub.s32 %s9, 2
      // Predicated region
      $region49: #{reduction_b_forward.4} parent=47 // pred_check
        %p943 = pneg %p120
      $region50: #{reduction_b_forward.4} parent=47 // pred_check_branch
        %945 = sbr.rel (%p943) target = $region52
      $region51: #{reduction_b_forward.4} parent=47 // pred_region
        %s946 = smul.u32 32, %s20
        %p947 = scmp.lt.s32.totalorder %s946, 63
        %s948 = scalar_select %p947, %s946, 63
        %s949 = smul.addr %s948, 4
        %s950 = scalar_lea.vmem %s3, %s949
      $region52: #{reduction_b_forward.4} parent=47 // pred_fallthru
        _
    $region48: #{reduction_b_forward.4} parent=5 // pred_fallthru
      _
  $region6: #{reduction_b_forward.4} parent=0 // loop_footer
    %s13 = sadd.s32 1, %s9
  $region7: #{reduction_b_forward.4} parent=0 // loop_footer_branch
    %8 = sbr.rel target = $region3
  $region8: #{reduction_b_forward.4} parent=0 // loop_exit
    _

// kernel: reduction_b_forward.3
$region0: #{reduction_b_forward.3}
  #allocation0 [shape = 'u32[]', space=smem, size = 0x4, offset = 0x4, fixed_abs, tag = 'smem constant byte address 0x4 - core index']
  #allocation1 [shape = 'u32[144,128]{1,0:T(1,128)}', space=vmem, size = 0x12000, scoped, tag = 'internal scratch']
  #allocation2 [shape = 'f32[256,128]{1,0:T(8,128)}', space=vmem, size = 0x20000, scoped, tag = 'scratch operand']
  %s0 = inlined_call_operand.vmem [shape: bf16[3,512,12], index: 0, kind: input, shape index: {}]
  %s1 = inlined_call_operand.vmem [shape: bf16[3,12,128], index: 1, kind: input, shape index: {}]
  %s2 = inlined_call_operand.vmem [shape: f32[1,128], index: 2, kind: input, shape index: {}]
  %s3 = inlined_call_operand.vmem [shape: bf16[512,128], index: 3, kind: output, shape index: {}]
  %s4 = sld [smem:[#allocation0]]
  $region53: #{reduction_b_forward.3} parent=0
    _
  %s6 = ssub.s32 1, %s4
  %s7 = scalar_select 0, %s6, %s4
  loop: start=0, step=1, limit=8
  $region2: #{reduction_b_forward.3} parent=0 // loop_pre_header
    _
  $region3: #{reduction_b_forward.3} parent=0 // loop_header
    %s9 = sphi 0, %s13
    %p10 = scmp.ge.s32.totalorder %s9, 8
    %s16 = sphi 0, %s28
    %s17 = sphi 0, %s24
    %s18 = sphi 0, %s16
    %s19 = sphi 0, %s17
    %s20 = sphi 0, %s18
    %s21 = sphi 0, %s19
    %s33 = sphi 0, %s35
    %s36 = sphi 0, %s33
    %s37 = sphi 0, %s36
    %s53 = sphi 0, %s37
    %s57 = sphi 0, %s57
    %s59 = sphi 0, %s57
    %s60 = sphi 0, %s59
    %s74 = sphi 0, %s60
    %s78 = sphi 0, %s78
    %s80 = sphi 0, %s78
    %s81 = sphi 0, %s80
    %s95 = sphi 0, %s81
    %s101 = sphi 0, %s103
    %s104 = sphi 0, %s101
    %s105 = sphi 0, %s104
    %s121 = sphi 0, %s105
  $region4: #{reduction_b_forward.3} parent=0 // loop_header_branch
    %12 = sbr.rel (%p10) target = $region8
  $region5: #{reduction_b_forward.3} parent=0 // loop_body
    %s14 = ssub.s32 %s9, 1
    %s15 = ssub.s32 %s9, 2
    %s22 = sadd.s32 1, %s17
    %p23 = scmp.ge.s32.totalorder %s22, 3
    %s24 = scalar_select %p23, 0, %s22
    %s25 = sadd.s32 1, %s16
    %s26 = scalar_select %p23, %s25, %s16
    %p27 = scmp.ge.s32.totalorder %s26, 2
    %s28 = scalar_select %p27, 0, %s26
    %s29 = ssub.s32 %s17, %s24
    %s30 = ssub.s32 %s16, %s28
    %s31 = sor.u32 %s29, %s30
    %p32 = scmp.eq.s32.totalorder %s31, 0
    %s34 = sadd.s32 %s33, 1
    %s35 = scalar_select %p32, %s33, %s34
    %p38 = pneg %p32
    %p39 = scmp.eq.s32.totalorder %s9, 5
    %p40 = por %p38, %p39
    %p41 = scmp.ne.s32.totalorder %s33, %s36
    %p42 = scmp.eq.s32.totalorder %s9, 0
    %p43 = por %p41, %p42
    %p44 = scmp.ne.s32.totalorder %s33, %s36
    %p45 = scmp.eq.s32.totalorder %s14, 5
    %p46 = por %p44, %p45
    %p47 = scmp.ne.s32.totalorder %s36, %s37
    %p48 = scmp.eq.s32.totalorder %s14, 0
    %p49 = por %p47, %p48
    %p50 = scmp.ne.s32.totalorder %s36, %s37
    %p51 = scmp.eq.s32.totalorder %s15, 5
    %p52 = por %p50, %p51
    %p54 = scmp.ne.s32.totalorder %s37, %s53
    %p55 = scmp.eq.s32.totalorder %s15, 0
    %p56 = por %p54, %p55
    %s58 = sadd.s32 %s57, 1
    %p61 = scmp.eq.s32.totalorder %s9, 5
    %p62 = scmp.ne.s32.totalorder %s57, %s59
    %p63 = scmp.eq.s32.totalorder %s9, 0
    %p64 = por %p62, %p63
    %p65 = scmp.ne.s32.totalorder %s57, %s59
    %p66 = scmp.eq.s32.totalorder %s14, 5
    %p67 = por %p65, %p66
    %p68 = scmp.ne.s32.totalorder %s59, %s60
    %p69 = scmp.eq.s32.totalorder %s14, 0
    %p70 = por %p68, %p69
    %p71 = scmp.ne.s32.totalorder %s59, %s60
    %p72 = scmp.eq.s32.totalorder %s15, 5
    %p73 = por %p71, %p72
    %p75 = scmp.ne.s32.totalorder %s60, %s74
    %p76 = scmp.eq.s32.totalorder %s15, 0
    %p77 = por %p75, %p76
    %s79 = sadd.s32 %s78, 1
    %p82 = scmp.eq.s32.totalorder %s9, 5
    %p83 = scmp.ne.s32.totalorder %s78, %s80
    %p84 = scmp.eq.s32.totalorder %s9, 0
    %p85 = por %p83, %p84
    %p86 = scmp.ne.s32.totalorder %s78, %s80
    %p87 = scmp.eq.s32.totalorder %s14, 5
    %p88 = por %p86, %p87
    %p89 = scmp.ne.s32.totalorder %s80, %s81
    %p90 = scmp.eq.s32.totalorder %s14, 0
    %p91 = por %p89, %p90
    %p92 = scmp.ne.s32.totalorder %s80, %s81
    %p93 = scmp.eq.s32.totalorder %s15, 5
    %p94 = por %p92, %p93
    %p96 = scmp.ne.s32.totalorder %s81, %s95
    %p97 = scmp.eq.s32.totalorder %s15, 0
    %p98 = por %p96, %p97
    %s99 = ssub.s32 %s16, %s28
    %p100 = scmp.eq.s32.totalorder %s99, 0
    %s102 = sadd.s32 %s101, 1
    %s103 = scalar_select %p100, %s101, %s102
    %p106 = pneg %p100
    %p107 = scmp.eq.s32.totalorder %s9, 5
    %p108 = por %p106, %p107
    %p109 = scmp.ne.s32.totalorder %s101, %s104
    %p110 = scmp.eq.s32.totalorder %s9, 0
    %p111 = por %p109, %p110
    %p112 = scmp.ne.s32.totalorder %s101, %s104
    %p113 = scmp.eq.s32.totalorder %s14, 5
    %p114 = por %p112, %p113
    %p115 = scmp.ne.s32.totalorder %s104, %s105
    %p116 = scmp.eq.s32.totalorder %s14, 0
    %p117 = por %p115, %p116
    %p118 = scmp.ne.s32.totalorder %s104, %s105
    %p119 = scmp.eq.s32.totalorder %s15, 5
    %p120 = por %p118, %p119
    %p122 = scmp.ne.s32.totalorder %s105, %s121
    %p123 = scmp.eq.s32.totalorder %s15, 0
    %p124 = por %p122, %p123
    %p125 = scmp.le.s32.totalorder 1, %s9
    %p126 = scmp.lt.s32.totalorder %s9, 7
    %p127 = pnand %p125, %p126
    %p128 = pneg %p127
    // Predicated region
    $region9: #{reduction_b_forward.3} parent=5 // pred_check
      _
    $region10: #{reduction_b_forward.3} parent=5 // pred_check_branch
      %130 = sbr.rel (%p127) target = $region12
    $region11: #{reduction_b_forward.3} parent=5 // pred_region
      %s131 = ssub.s32 %s9, 1
      // Predicated region
      $region13: #{reduction_b_forward.3} parent=11 // pred_check
        %p132 = pneg %p70
      $region14: #{reduction_b_forward.3} parent=11 // pred_check_branch
        %134 = sbr.rel (%p132) target = $region16
      $region15: #{reduction_b_forward.3} parent=11 // pred_region
        _
      $region16: #{reduction_b_forward.3} parent=11 // pred_fallthru
        _
      // Predicated region
      $region17: #{reduction_b_forward.3} parent=11 // pred_check
        %p135 = pneg %p91
      $region18: #{reduction_b_forward.3} parent=11 // pred_check_branch
        %137 = sbr.rel (%p135) target = $region20
      $region19: #{reduction_b_forward.3} parent=11 // pred_region
        _
      $region20: #{reduction_b_forward.3} parent=11 // pred_fallthru
        _
    $region12: #{reduction_b_forward.3} parent=5 // pred_fallthru
      _
    %p138 = scmp.lt.s32.totalorder %s9, 6
    // Predicated region
    $region21: #{reduction_b_forward.3} parent=5 // pred_check
      %p139 = pneg %p138
    $region22: #{reduction_b_forward.3} parent=5 // pred_check_branch
      %141 = sbr.rel (%p139) target = $region24
    $region23: #{reduction_b_forward.3} parent=5 // pred_region
      // Predicated region
      $region25: #{reduction_b_forward.3} parent=23 // pred_check
        %p142 = pneg %p43
      $region26: #{reduction_b_forward.3} parent=23 // pred_check_branch
        %144 = sbr.rel (%p142) target = $region28
      $region27: #{reduction_b_forward.3} parent=23 // pred_region
        %s145 = smul.u32 32, %s16
        %p146 = scmp.lt.s32.totalorder %s17, 2
        %s147 = scalar_select %p146, %s17, 2
        %p148 = scmp.lt.s32.totalorder %s145, 63
        %s149 = scalar_select %p148, %s145, 63
        %s150 = smul.addr %s147, 64
        %s151 = sadd.s32 %s149, %s150
        %s152 = smul.addr %s151, 4
        %s153 = scalar_lea.vmem %s0, %s152
        %s154 = smul.u32 32, %s16
      $region28: #{reduction_b_forward.3} parent=23 // pred_fallthru
        _
    $region24: #{reduction_b_forward.3} parent=5 // pred_fallthru
      _
    %p155 = scmp.le.s32.totalorder 1, %s9
    %p156 = scmp.lt.s32.totalorder %s9, 7
    %p157 = pnand %p155, %p156
    %p158 = pneg %p157
    // Predicated region
    $region29: #{reduction_b_forward.3} parent=5 // pred_check
      _
    $region30: #{reduction_b_forward.3} parent=5 // pred_check_branch
      %160 = sbr.rel (%p157) target = $region32
    $region31: #{reduction_b_forward.3} parent=5 // pred_region
      %s161 = ssub.s32 %s9, 1
      %s162 = smul.u32 32, %s18
      %p163 = scmp.lt.s32.totalorder %s19, 2
      %s164 = scalar_select %p163, %s19, 2
      %p165 = scmp.lt.s32.totalorder %s162, 63
      %s166 = scalar_select %p165, %s162, 63
      %s167 = smul.addr %s164, 64
      %s168 = sadd.s32 %s166, %s167
      %s169 = smul.addr %s168, 4
      %s170 = scalar_lea.vmem %s0, %s169
      %p171 = pneg %p49
      %p172 = pneg %p46
      %p173 = pneg %p70
      %p174 = pneg %p67
      %p175 = pneg %p91
      %p176 = pneg %p88
      %p177 = pneg %p117
      %p178 = pneg %p114
      %s179 = smul.u32 32, %s18
      %p180 = scmp.lt.s32.totalorder %s179, 63
      %s181 = scalar_select %p180, %s179, 63
      %s182 = smul.addr %s181, 4
      %s183 = scalar_lea.vmem %s3, %s182
      %s184 = smul.u32 32, %s18
      %p185 = scmp.lt.s32.totalorder %s19, 2
      %s186 = scalar_select %p185, %s19, 2
      %p187 = scmp.lt.s32.totalorder %s184, 63
      %s188 = scalar_select %p187, %s184, 63
      %s189 = smul.addr %s186, 64
      %s190 = sadd.s32 %s188, %s189
      %s191 = smul.addr %s190, 4
      %s192 = scalar_lea.vmem %s0, %s191
      %s193 = smul.u32 32, %s18
      %s194 = smul.u32 32, %s18
      %p195 = scmp.lt.s32.totalorder %s194, 63
      %s196 = scalar_select %p195, %s194, 63
      %s197 = smul.addr %s196, 4
      %s198 = scalar_lea.vmem %s3, %s197
      %s199 = smul.u32 32, %s18
      %p201 = scmp.eq.s32.totalorder %s19, 0
      // Predicated region
      $region33: #{reduction_b_forward.3} parent=31 // pred_check
        %p202 = pneg %p201
      $region34: #{reduction_b_forward.3} parent=31 // pred_check_branch
        %204 = sbr.rel (%p202) target = $region36
      $region35: #{reduction_b_forward.3} parent=31 // pred_region
        %205 = vst [vmem:[#allocation2] sm:$0xff] 0.0
        %206 = vst [vmem:[#allocation2 + $0x8] sm:$0xff] 0.0
        %207 = vst [vmem:[#allocation2 + $0x10] sm:$0xff] 0.0
        %208 = vst [vmem:[#allocation2 + $0x18] sm:$0xff] 0.0
        %209 = vst [vmem:[#allocation2 + $0x20] sm:$0xff] 0.0
        %210 = vst [vmem:[#allocation2 + $0x28] sm:$0xff] 0.0
        %211 = vst [vmem:[#allocation2 + $0x30] sm:$0xff] 0.0
        %212 = vst [vmem:[#allocation2 + $0x38] sm:$0xff] 0.0
        %213 = vst [vmem:[#allocation2 + $0x40] sm:$0xff] 0.0
        %214 = vst [vmem:[#allocation2 + $0x48] sm:$0xff] 0.0
        %215 = vst [vmem:[#allocation2 + $0x50] sm:$0xff] 0.0
        %216 = vst [vmem:[#allocation2 + $0x58] sm:$0xff] 0.0
        %217 = vst [vmem:[#allocation2 + $0x60] sm:$0xff] 0.0
        %218 = vst [vmem:[#allocation2 + $0x68] sm:$0xff] 0.0
        %219 = vst [vmem:[#allocation2 + $0x70] sm:$0xff] 0.0
        %220 = vst [vmem:[#allocation2 + $0x78] sm:$0xff] 0.0
        %221 = vst [vmem:[#allocation2 + $0x80] sm:$0xff] 0.0
        %222 = vst [vmem:[#allocation2 + $0x88] sm:$0xff] 0.0
        %223 = vst [vmem:[#allocation2 + $0x90] sm:$0xff] 0.0
        %224 = vst [vmem:[#allocation2 + $0x98] sm:$0xff] 0.0
        %225 = vst [vmem:[#allocation2 + $0xa0] sm:$0xff] 0.0
        %226 = vst [vmem:[#allocation2 + $0xa8] sm:$0xff] 0.0
        %227 = vst [vmem:[#allocation2 + $0xb0] sm:$0xff] 0.0
        %228 = vst [vmem:[#allocation2 + $0xb8] sm:$0xff] 0.0
        %229 = vst [vmem:[#allocation2 + $0xc0] sm:$0xff] 0.0
        %230 = vst [vmem:[#allocation2 + $0xc8] sm:$0xff] 0.0
        %231 = vst [vmem:[#allocation2 + $0xd0] sm:$0xff] 0.0
        %232 = vst [vmem:[#allocation2 + $0xd8] sm:$0xff] 0.0
        %233 = vst [vmem:[#allocation2 + $0xe0] sm:$0xff] 0.0
        %234 = vst [vmem:[#allocation2 + $0xe8] sm:$0xff] 0.0
        %235 = vst [vmem:[#allocation2 + $0xf0] sm:$0xff] 0.0
        %236 = vst [vmem:[#allocation2 + $0xf8] sm:$0xff] 0.0
      $region36: #{reduction_b_forward.3} parent=31 // pred_fallthru
        _
      %v237 = vld [vmem:[#allocation2] sm:$0xff]
      %v238 = vld [vmem:[#allocation2 + $0x8] sm:$0xff]
      %v239 = vld [vmem:[#allocation2 + $0x10] sm:$0xff]
      %v240 = vld [vmem:[#allocation2 + $0x18] sm:$0xff]
      %v241 = vld [vmem:[#allocation2 + $0x20] sm:$0xff]
      %v242 = vld [vmem:[#allocation2 + $0x28] sm:$0xff]
      %v243 = vld [vmem:[#allocation2 + $0x30] sm:$0xff]
      %v244 = vld [vmem:[#allocation2 + $0x38] sm:$0xff]
      %v245 = vld [vmem:[#allocation2 + $0x40] sm:$0xff]
      %v246 = vld [vmem:[#allocation2 + $0x48] sm:$0xff]
      %v247 = vld [vmem:[#allocation2 + $0x50] sm:$0xff]
      %v248 = vld [vmem:[#allocation2 + $0x58] sm:$0xff]
      %v249 = vld [vmem:[#allocation2 + $0x60] sm:$0xff]
      %v250 = vld [vmem:[#allocation2 + $0x68] sm:$0xff]
      %v251 = vld [vmem:[#allocation2 + $0x70] sm:$0xff]
      %v252 = vld [vmem:[#allocation2 + $0x78] sm:$0xff]
      %v253 = vld [vmem:[#allocation2 + $0x80] sm:$0xff]
      %v254 = vld [vmem:[#allocation2 + $0x88] sm:$0xff]
      %v255 = vld [vmem:[#allocation2 + $0x90] sm:$0xff]
      %v256 = vld [vmem:[#allocation2 + $0x98] sm:$0xff]
      %v257 = vld [vmem:[#allocation2 + $0xa0] sm:$0xff]
      %v258 = vld [vmem:[#allocation2 + $0xa8] sm:$0xff]
      %v259 = vld [vmem:[#allocation2 + $0xb0] sm:$0xff]
      %v260 = vld [vmem:[#allocation2 + $0xb8] sm:$0xff]
      %v261 = vld [vmem:[#allocation2 + $0xc0] sm:$0xff]
      %v262 = vld [vmem:[#allocation2 + $0xc8] sm:$0xff]
      %v263 = vld [vmem:[#allocation2 + $0xd0] sm:$0xff]
      %v264 = vld [vmem:[#allocation2 + $0xd8] sm:$0xff]
      %v265 = vld [vmem:[#allocation2 + $0xe0] sm:$0xff]
      %v266 = vld [vmem:[#allocation2 + $0xe8] sm:$0xff]
      %v267 = vld [vmem:[#allocation2 + $0xf0] sm:$0xff]
      %v268 = vld [vmem:[#allocation2 + $0xf8] sm:$0xff]
      %v269 = vld [vmem:[%s192] sm:$0xf]
      %v270 = vld [vmem:[%s192 + $0x4] sm:$0xf]
      %v271 = vld [vmem:[%s192 + $0x8] sm:$0xf]
      %v272 = vld [vmem:[%s192 + $0xc] sm:$0xf]
      %v273 = vld [vmem:[%s192 + $0x10] sm:$0xf]
      %v274 = vld [vmem:[%s192 + $0x14] sm:$0xf]
      %v275 = vld [vmem:[%s192 + $0x18] sm:$0xf]
      %v276 = vld [vmem:[%s192 + $0x1c] sm:$0xf]
      %v277 = vld [vmem:[%s192 + $0x20] sm:$0xf]
      %v278 = vld [vmem:[%s192 + $0x24] sm:$0xf]
      %v279 = vld [vmem:[%s192 + $0x28] sm:$0xf]
      %v280 = vld [vmem:[%s192 + $0x2c] sm:$0xf]
      %v281 = vld [vmem:[%s192 + $0x30] sm:$0xf]
      %v282 = vld [vmem:[%s192 + $0x34] sm:$0xf]
      %v283 = vld [vmem:[%s192 + $0x38] sm:$0xf]
      %v284 = vld [vmem:[%s192 + $0x3c] sm:$0xf]
      %v285 = vld [vmem:[%s192 + $0x40] sm:$0xf]
      %v286 = vld [vmem:[%s192 + $0x44] sm:$0xf]
      %v287 = vld [vmem:[%s192 + $0x48] sm:$0xf]
      %v288 = vld [vmem:[%s192 + $0x4c] sm:$0xf]
      %v289 = vld [vmem:[%s192 + $0x50] sm:$0xf]
      %v290 = vld [vmem:[%s192 + $0x54] sm:$0xf]
      %v291 = vld [vmem:[%s192 + $0x58] sm:$0xf]
      %v292 = vld [vmem:[%s192 + $0x5c] sm:$0xf]
      %v293 = vld [vmem:[%s192 + $0x60] sm:$0xf]
      %v294 = vld [vmem:[%s192 + $0x64] sm:$0xf]
      %v295 = vld [vmem:[%s192 + $0x68] sm:$0xf]
      %v296 = vld [vmem:[%s192 + $0x6c] sm:$0xf]
      %v297 = vld [vmem:[%s192 + $0x70] sm:$0xf]
      %v298 = vld [vmem:[%s192 + $0x74] sm:$0xf]
      %v299 = vld [vmem:[%s192 + $0x78] sm:$0xf]
      %v300 = vld [vmem:[%s192 + $0x7c] sm:$0xf]
      %s301 = smul.u32 %s19, 2
      %s302 = smul.addr %s301, 4
      %s303 = scalar_lea.vmem %s1, %s302
      %v304 = vld [vmem:[%s303] sm:$0xf]
      %v305 = vld [vmem:[%s303 + $0x4] sm:$0x3]
      %v338 = vunpack.c.l.b16 %v269
      %v339 = vunpack.c.l.b16 %v270
      %v340 = vunpack.c.l.b16 %v271
      %v341 = vunpack.c.l.b16 %v272
      %v342 = vunpack.c.l.b16 %v273
      %v343 = vunpack.c.l.b16 %v274
      %v344 = vunpack.c.l.b16 %v275
      %v345 = vunpack.c.l.b16 %v276
      %v346 = vunpack.c.l.b16 %v277
      %v347 = vunpack.c.l.b16 %v278
      %v348 = vunpack.c.l.b16 %v279
      %v349 = vunpack.c.l.b16 %v280
      %v350 = vunpack.c.l.b16 %v281
      %v351 = vunpack.c.l.b16 %v282
      %v352 = vunpack.c.l.b16 %v283
      %v353 = vunpack.c.l.b16 %v284
      %v354 = vunpack.c.l.b16 %v285
      %v355 = vunpack.c.l.b16 %v286
      %v356 = vunpack.c.l.b16 %v287
      %v357 = vunpack.c.l.b16 %v288
      %v358 = vunpack.c.l.b16 %v289
      %v359 = vunpack.c.l.b16 %v290
      %v360 = vunpack.c.l.b16 %v291
      %v361 = vunpack.c.l.b16 %v292
      %v362 = vunpack.c.l.b16 %v293
      %v363 = vunpack.c.l.b16 %v294
      %v364 = vunpack.c.l.b16 %v295
      %v365 = vunpack.c.l.b16 %v296
      %v366 = vunpack.c.l.b16 %v297
      %v367 = vunpack.c.l.b16 %v298
      %v368 = vunpack.c.l.b16 %v299
      %v369 = vunpack.c.l.b16 %v300
      %v370 = vpack.c.b16 %v339, %v338
      %v371 = vpack.c.b16 %v341, %v340
      %v372 = vpack.c.b16 %v343, %v342
      %v373 = vpack.c.b16 %v345, %v344
      %v374 = vpack.c.b16 %v347, %v346
      %v375 = vpack.c.b16 %v349, %v348
      %v376 = vpack.c.b16 %v351, %v350
      %v377 = vpack.c.b16 %v353, %v352
      %v378 = vpack.c.b16 %v355, %v354
      %v379 = vpack.c.b16 %v357, %v356
      %v380 = vpack.c.b16 %v359, %v358
      %v381 = vpack.c.b16 %v361, %v360
      %v382 = vpack.c.b16 %v363, %v362
      %v383 = vpack.c.b16 %v365, %v364
      %v384 = vpack.c.b16 %v367, %v366
      %v385 = vpack.c.b16 %v369, %v368
      %v388 = vunpack.c.l.b16 %v304
      %v389 = vunpack.c.l.b16 %v305
      %v390 = vpack.c.b16 %v389, %v388
      %vm391 = vcmask 97280
      %v393 = vsel %vm391, %v370, 0
      %v396 = vsel %vm391, %v371, 0
      %v399 = vsel %vm391, %v372, 0
      %v402 = vsel %vm391, %v373, 0
      %v405 = vsel %vm391, %v374, 0
      %v408 = vsel %vm391, %v375, 0
      %v411 = vsel %vm391, %v376, 0
      %v414 = vsel %vm391, %v377, 0
      %v417 = vsel %vm391, %v378, 0
      %v420 = vsel %vm391, %v379, 0
      %v423 = vsel %vm391, %v380, 0
      %v426 = vsel %vm391, %v381, 0
      %v429 = vsel %vm391, %v382, 0
      %v432 = vsel %vm391, %v383, 0
      %v435 = vsel %vm391, %v384, 0
      %v438 = vsel %vm391, %v385, 0
      %vm440 = vcmask 1045504
      %v442 = vsel %vm440, %v390, 0
      %444 = vmatprep.subr.bf16.mxu0 0
      %445 = vmatpush1.bf16.msra.mxu0 %v442
      %446 = vmatprep.subr.bf16.mxu0 0
      %447 = vmatpush1.bf16.msra.mxu0 0
      %448 = vmatprep.subr.bf16.mxu0 0
      %449 = vmatpush1.bf16.msra.mxu0 0
      %450 = vmatprep.subr.bf16.mxu0 0
      %451 = vmatpush1.bf16.msra.mxu0 0
      %452 = vmatprep.subr.bf16.mxu0 0
      %453 = vmatpush1.bf16.msra.mxu0 0
      %454 = vmatprep.subr.bf16.mxu0 0
      %455 = vmatpush1.bf16.msra.mxu0 0
      %456 = vmatprep.subr.bf16.mxu0 0
      %457 = vmatpush1.bf16.msra.mxu0 0
      %458 = vmatprep.subr.bf16.mxu0 0
      %459 = vmatpush1.bf16.msra.mxu0 0
      %460 = vmatprep.subr.bf16.mxu0 0
      %461 = vmatpush1.bf16.msra.mxu0 0
      %462 = vmatprep.subr.bf16.mxu0 0
      %463 = vmatpush1.bf16.msra.mxu0 0
      %464 = vmatprep.subr.bf16.mxu0 0
      %465 = vmatpush1.bf16.msra.mxu0 0
      %466 = vmatprep.subr.bf16.mxu0 0
      %467 = vmatpush1.bf16.msra.mxu0 0
      %468 = vmatprep.subr.bf16.mxu0 0
      %469 = vmatpush1.bf16.msra.mxu0 0
      %470 = vmatprep.subr.bf16.mxu0 0
      %471 = vmatpush1.bf16.msra.mxu0 0
      %472 = vmatprep.subr.bf16.mxu0 0
      %473 = vmatpush1.bf16.msra.mxu0 0
      %474 = vmatprep.subr.bf16.mxu0 0
      %475 = vmatpush1.bf16.msra.mxu0 0
      %476 = vmatprep.mubr.bf16.mxu0 0
      %477 = vmatmul.mubr.bf16.gmra.mrb[0].mxu0 %v393
      %v478 = vpop.f32.mrb[0].mxu0
      %v479 = vadd.f32 0.0, %v478
      %v480 = vpop.f32.mrb[0].mxu0
      %v481 = vpop.f32.mrb[0].mxu0
      %v482 = vadd.f32 0.0, %v481
      %v483 = vpop.f32.mrb[0].mxu0
      %484 = vmatprep.mubr.bf16.mxu0 0
      %485 = vmatmul.mubr.bf16.gmra.mrb[0].mxu0 %v396
      %v486 = vpop.f32.mrb[0].mxu0
      %v487 = vadd.f32 0.0, %v486
      %v488 = vpop.f32.mrb[0].mxu0
      %v489 = vpop.f32.mrb[0].mxu0
      %v490 = vadd.f32 0.0, %v489
      %v491 = vpop.f32.mrb[0].mxu0
      %492 = vmatprep.mubr.bf16.mxu0 0
      %493 = vmatmul.mubr.bf16.gmra.mrb[0].mxu0 %v399
      %v494 = vpop.f32.mrb[0].mxu0
      %v495 = vadd.f32 0.0, %v494
      %v496 = vpop.f32.mrb[0].mxu0
      %v497 = vpop.f32.mrb[0].mxu0
      %v498 = vadd.f32 0.0, %v497
      %v499 = vpop.f32.mrb[0].mxu0
      %500 = vmatprep.mubr.bf16.mxu0 0
      %501 = vmatmul.mubr.bf16.gmra.mrb[0].mxu0 %v402
      %v502 = vpop.f32.mrb[0].mxu0
      %v503 = vadd.f32 0.0, %v502
      %v504 = vpop.f32.mrb[0].mxu0
      %v505 = vpop.f32.mrb[0].mxu0
      %v506 = vadd.f32 0.0, %v505
      %v507 = vpop.f32.mrb[0].mxu0
      %508 = vmatprep.mubr.bf16.mxu0 0
      %509 = vmatmul.mubr.bf16.gmra.mrb[0].mxu0 %v405
      %v510 = vpop.f32.mrb[0].mxu0
      %v511 = vadd.f32 0.0, %v510
      %v512 = vpop.f32.mrb[0].mxu0
      %v513 = vpop.f32.mrb[0].mxu0
      %v514 = vadd.f32 0.0, %v513
      %v515 = vpop.f32.mrb[0].mxu0
      %516 = vmatprep.mubr.bf16.mxu0 0
      %517 = vmatmul.mubr.bf16.gmra.mrb[0].mxu0 %v408
      %v518 = vpop.f32.mrb[0].mxu0
      %v519 = vadd.f32 0.0, %v518
      %v520 = vpop.f32.mrb[0].mxu0
      %v521 = vpop.f32.mrb[0].mxu0
      %v522 = vadd.f32 0.0, %v521
      %v523 = vpop.f32.mrb[0].mxu0
      %524 = vmatprep.mubr.bf16.mxu0 0
      %525 = vmatmul.mubr.bf16.gmra.mrb[0].mxu0 %v411
      %v526 = vpop.f32.mrb[0].mxu0
      %v527 = vadd.f32 0.0, %v526
      %v528 = vpop.f32.mrb[0].mxu0
      %v529 = vpop.f32.mrb[0].mxu0
      %v530 = vadd.f32 0.0, %v529
      %v531 = vpop.f32.mrb[0].mxu0
      %532 = vmatprep.mubr.bf16.mxu0 0
      %533 = vmatmul.mubr.bf16.gmra.mrb[0].mxu0 %v414
      %v534 = vpop.f32.mrb[0].mxu0
      %v535 = vadd.f32 0.0, %v534
      %v536 = vpop.f32.mrb[0].mxu0
      %v537 = vpop.f32.mrb[0].mxu0
      %v538 = vadd.f32 0.0, %v537
      %v539 = vpop.f32.mrb[0].mxu0
      %540 = vmatprep.mubr.bf16.mxu0 0
      %541 = vmatmul.mubr.bf16.gmra.mrb[0].mxu0 %v417
      %v542 = vpop.f32.mrb[0].mxu0
      %v543 = vadd.f32 0.0, %v542
      %v544 = vpop.f32.mrb[0].mxu0
      %v545 = vpop.f32.mrb[0].mxu0
      %v546 = vadd.f32 0.0, %v545
      %v547 = vpop.f32.mrb[0].mxu0
      %548 = vmatprep.mubr.bf16.mxu0 0
      %549 = vmatmul.mubr.bf16.gmra.mrb[0].mxu0 %v420
      %v550 = vpop.f32.mrb[0].mxu0
      %v551 = vadd.f32 0.0, %v550
      %v552 = vpop.f32.mrb[0].mxu0
      %v553 = vpop.f32.mrb[0].mxu0
      %v554 = vadd.f32 0.0, %v553
      %v555 = vpop.f32.mrb[0].mxu0
      %556 = vmatprep.mubr.bf16.mxu0 0
      %557 = vmatmul.mubr.bf16.gmra.mrb[0].mxu0 %v423
      %v558 = vpop.f32.mrb[0].mxu0
      %v559 = vadd.f32 0.0, %v558
      %v560 = vpop.f32.mrb[0].mxu0
      %v561 = vpop.f32.mrb[0].mxu0
      %v562 = vadd.f32 0.0, %v561
      %v563 = vpop.f32.mrb[0].mxu0
      %564 = vmatprep.mubr.bf16.mxu0 0
      %565 = vmatmul.mubr.bf16.gmra.mrb[0].mxu0 %v426
      %v566 = vpop.f32.mrb[0].mxu0
      %v567 = vadd.f32 0.0, %v566
      %v568 = vpop.f32.mrb[0].mxu0
      %v569 = vpop.f32.mrb[0].mxu0
      %v570 = vadd.f32 0.0, %v569
      %v571 = vpop.f32.mrb[0].mxu0
      %572 = vmatprep.mubr.bf16.mxu0 0
      %573 = vmatmul.mubr.bf16.gmra.mrb[0].mxu0 %v429
      %v574 = vpop.f32.mrb[0].mxu0
      %v575 = vadd.f32 0.0, %v574
      %v576 = vpop.f32.mrb[0].mxu0
      %v577 = vpop.f32.mrb[0].mxu0
      %v578 = vadd.f32 0.0, %v577
      %v579 = vpop.f32.mrb[0].mxu0
      %580 = vmatprep.mubr.bf16.mxu0 0
      %581 = vmatmul.mubr.bf16.gmra.mrb[0].mxu0 %v432
      %v582 = vpop.f32.mrb[0].mxu0
      %v583 = vadd.f32 0.0, %v582
      %v584 = vpop.f32.mrb[0].mxu0
      %v585 = vpop.f32.mrb[0].mxu0
      %v586 = vadd.f32 0.0, %v585
      %v587 = vpop.f32.mrb[0].mxu0
      %588 = vmatprep.mubr.bf16.mxu0 0
      %589 = vmatmul.mubr.bf16.gmra.mrb[0].mxu0 %v435
      %v590 = vpop.f32.mrb[0].mxu0
      %v591 = vadd.f32 0.0, %v590
      %v592 = vpop.f32.mrb[0].mxu0
      %v593 = vpop.f32.mrb[0].mxu0
      %v594 = vadd.f32 0.0, %v593
      %v595 = vpop.f32.mrb[0].mxu0
      %596 = vmatprep.mubr.bf16.mxu0 0
      %597 = vmatmul.mubr.bf16.gmra.mrb[0].mxu0 %v438
      %v598 = vpop.f32.mrb[0].mxu0
      %v599 = vadd.f32 0.0, %v598
      %v600 = vpop.f32.mrb[0].mxu0
      %v601 = vpop.f32.mrb[0].mxu0
      %v602 = vadd.f32 0.0, %v601
      %v603 = vpop.f32.mrb[0].mxu0
      %604 = vdwg.mxu0
      %v605 = vadd.f32 %v237, %v479
      %v606 = vadd.f32 %v238, %v482
      %v607 = vadd.f32 %v239, %v487
      %v608 = vadd.f32 %v240, %v490
      %v609 = vadd.f32 %v241, %v495
      %v610 = vadd.f32 %v242, %v498
      %v611 = vadd.f32 %v243, %v503
      %v612 = vadd.f32 %v244, %v506
      %v613 = vadd.f32 %v245, %v511
      %v614 = vadd.f32 %v246, %v514
      %v615 = vadd.f32 %v247, %v519
      %v616 = vadd.f32 %v248, %v522
      %v617 = vadd.f32 %v249, %v527
      %v618 = vadd.f32 %v250, %v530
      %v619 = vadd.f32 %v251, %v535
      %v620 = vadd.f32 %v252, %v538
      %v621 = vadd.f32 %v253, %v543
      %v622 = vadd.f32 %v254, %v546
      %v623 = vadd.f32 %v255, %v551
      %v624 = vadd.f32 %v256, %v554
      %v625 = vadd.f32 %v257, %v559
      %v626 = vadd.f32 %v258, %v562
      %v627 = vadd.f32 %v259, %v567
      %v628 = vadd.f32 %v260, %v570
      %v629 = vadd.f32 %v261, %v575
      %v630 = vadd.f32 %v262, %v578
      %v631 = vadd.f32 %v263, %v583
      %v632 = vadd.f32 %v264, %v586
      %v633 = vadd.f32 %v265, %v591
      %v634 = vadd.f32 %v266, %v594
      %v635 = vadd.f32 %v267, %v599
      %v636 = vadd.f32 %v268, %v602
      %637 = vst [vmem:[#allocation2] sm:$0xff] %v605
      %638 = vst [vmem:[#allocation2 + $0x8] sm:$0xff] %v606
      %639 = vst [vmem:[#allocation2 + $0x10] sm:$0xff] %v607
      %640 = vst [vmem:[#allocation2 + $0x18] sm:$0xff] %v608
      %641 = vst [vmem:[#allocation2 + $0x20] sm:$0xff] %v609
      %642 = vst [vmem:[#allocation2 + $0x28] sm:$0xff] %v610
      %643 = vst [vmem:[#allocation2 + $0x30] sm:$0xff] %v611
      %644 = vst [vmem:[#allocation2 + $0x38] sm:$0xff] %v612
      %645 = vst [vmem:[#allocation2 + $0x40] sm:$0xff] %v613
      %646 = vst [vmem:[#allocation2 + $0x48] sm:$0xff] %v614
      %647 = vst [vmem:[#allocation2 + $0x50] sm:$0xff] %v615
      %648 = vst [vmem:[#allocation2 + $0x58] sm:$0xff] %v616
      %649 = vst [vmem:[#allocation2 + $0x60] sm:$0xff] %v617
      %650 = vst [vmem:[#allocation2 + $0x68] sm:$0xff] %v618
      %651 = vst [vmem:[#allocation2 + $0x70] sm:$0xff] %v619
      %652 = vst [vmem:[#allocation2 + $0x78] sm:$0xff] %v620
      %653 = vst [vmem:[#allocation2 + $0x80] sm:$0xff] %v621
      %654 = vst [vmem:[#allocation2 + $0x88] sm:$0xff] %v622
      %655 = vst [vmem:[#allocation2 + $0x90] sm:$0xff] %v623
      %656 = vst [vmem:[#allocation2 + $0x98] sm:$0xff] %v624
      %657 = vst [vmem:[#allocation2 + $0xa0] sm:$0xff] %v625
      %658 = vst [vmem:[#allocation2 + $0xa8] sm:$0xff] %v626
      %659 = vst [vmem:[#allocation2 + $0xb0] sm:$0xff] %v627
      %660 = vst [vmem:[#allocation2 + $0xb8] sm:$0xff] %v628
      %661 = vst [vmem:[#allocation2 + $0xc0] sm:$0xff] %v629
      %662 = vst [vmem:[#allocation2 + $0xc8] sm:$0xff] %v630
      %663 = vst [vmem:[#allocation2 + $0xd0] sm:$0xff] %v631
      %664 = vst [vmem:[#allocation2 + $0xd8] sm:$0xff] %v632
      %665 = vst [vmem:[#allocation2 + $0xe0] sm:$0xff] %v633
      %666 = vst [vmem:[#allocation2 + $0xe8] sm:$0xff] %v634
      %667 = vst [vmem:[#allocation2 + $0xf0] sm:$0xff] %v635
      %668 = vst [vmem:[#allocation2 + $0xf8] sm:$0xff] %v636
      %p669 = scmp.eq.s32.totalorder %s19, 2
      // Predicated region
      $region37: #{reduction_b_forward.3} parent=31 // pred_check
        %p670 = pneg %p669
      $region38: #{reduction_b_forward.3} parent=31 // pred_check_branch
        %672 = sbr.rel (%p670) target = $region40
      $region39: #{reduction_b_forward.3} parent=31 // pred_region
        %v673 = vld [vmem:[#allocation2] sm:$0xff]
        %v674 = vld [vmem:[#allocation2 + $0x8] sm:$0xff]
        %v675 = vld [vmem:[#allocation2 + $0x10] sm:$0xff]
        %v676 = vld [vmem:[#allocation2 + $0x18] sm:$0xff]
        %v677 = vld [vmem:[#allocation2 + $0x20] sm:$0xff]
        %v678 = vld [vmem:[#allocation2 + $0x28] sm:$0xff]
        %v679 = vld [vmem:[#allocation2 + $0x30] sm:$0xff]
        %v680 = vld [vmem:[#allocation2 + $0x38] sm:$0xff]
        %v681 = vld [vmem:[#allocation2 + $0x40] sm:$0xff]
        %v682 = vld [vmem:[#allocation2 + $0x48] sm:$0xff]
        %v683 = vld [vmem:[#allocation2 + $0x50] sm:$0xff]
        %v684 = vld [vmem:[#allocation2 + $0x58] sm:$0xff]
        %v685 = vld [vmem:[#allocation2 + $0x60] sm:$0xff]
        %v686 = vld [vmem:[#allocation2 + $0x68] sm:$0xff]
        %v687 = vld [vmem:[#allocation2 + $0x70] sm:$0xff]
        %v688 = vld [vmem:[#allocation2 + $0x78] sm:$0xff]
        %v689 = vld [vmem:[#allocation2 + $0x80] sm:$0xff]
        %v690 = vld [vmem:[#allocation2 + $0x88] sm:$0xff]
        %v691 = vld [vmem:[#allocation2 + $0x90] sm:$0xff]
        %v692 = vld [vmem:[#allocation2 + $0x98] sm:$0xff]
        %v693 = vld [vmem:[#allocation2 + $0xa0] sm:$0xff]
        %v694 = vld [vmem:[#allocation2 + $0xa8] sm:$0xff]
        %v695 = vld [vmem:[#allocation2 + $0xb0] sm:$0xff]
        %v696 = vld [vmem:[#allocation2 + $0xb8] sm:$0xff]
        %v697 = vld [vmem:[#allocation2 + $0xc0] sm:$0xff]
        %v698 = vld [vmem:[#allocation2 + $0xc8] sm:$0xff]
        %v699 = vld [vmem:[#allocation2 + $0xd0] sm:$0xff]
        %v700 = vld [vmem:[#allocation2 + $0xd8] sm:$0xff]
        %v701 = vld [vmem:[#allocation2 + $0xe0] sm:$0xff]
        %v702 = vld [vmem:[#allocation2 + $0xe8] sm:$0xff]
        %v703 = vld [vmem:[#allocation2 + $0xf0] sm:$0xff]
        %v704 = vld [vmem:[#allocation2 + $0xf8] sm:$0xff]
        %v705 = vld [vmem:[%s2] sm:$0x1]
        %v707 = vlaneseq
        %v708 = vshrl.u32 %v707, 7
        %v709 = vsub.s32 0, %v708
        %v710 = vrot.slane %v705, %v709
        %v712 = vadd.f32 %v673, %v710
        %v713 = vadd.f32 %v674, %v710
        %v714 = vadd.f32 %v675, %v710
        %v715 = vadd.f32 %v676, %v710
        %v716 = vadd.f32 %v677, %v710
        %v717 = vadd.f32 %v678, %v710
        %v718 = vadd.f32 %v679, %v710
        %v719 = vadd.f32 %v680, %v710
        %v720 = vadd.f32 %v681, %v710
        %v721 = vadd.f32 %v682, %v710
        %v722 = vadd.f32 %v683, %v710
        %v723 = vadd.f32 %v684, %v710
        %v724 = vadd.f32 %v685, %v710
        %v725 = vadd.f32 %v686, %v710
        %v726 = vadd.f32 %v687, %v710
        %v727 = vadd.f32 %v688, %v710
        %v728 = vadd.f32 %v689, %v710
        %v729 = vadd.f32 %v690, %v710
        %v730 = vadd.f32 %v691, %v710
        %v731 = vadd.f32 %v692, %v710
        %v732 = vadd.f32 %v693, %v710
        %v733 = vadd.f32 %v694, %v710
        %v734 = vadd.f32 %v695, %v710
        %v735 = vadd.f32 %v696, %v710
        %v736 = vadd.f32 %v697, %v710
        %v737 = vadd.f32 %v698, %v710
        %v738 = vadd.f32 %v699, %v710
        %v739 = vadd.f32 %v700, %v710
        %v740 = vadd.f32 %v701, %v710
        %v741 = vadd.f32 %v702, %v710
        %v742 = vadd.f32 %v703, %v710
        %v743 = vadd.f32 %v704, %v710
        %v744 = vmax.f32 %v712, 0.0
        %v745 = vmax.f32 %v713, 0.0
        %v746 = vmax.f32 %v714, 0.0
        %v747 = vmax.f32 %v715, 0.0
        %v748 = vmax.f32 %v716, 0.0
        %v749 = vmax.f32 %v717, 0.0
        %v750 = vmax.f32 %v718, 0.0
        %v751 = vmax.f32 %v719, 0.0
        %v752 = vmax.f32 %v720, 0.0
        %v753 = vmax.f32 %v721, 0.0
        %v754 = vmax.f32 %v722, 0.0
        %v755 = vmax.f32 %v723, 0.0
        %v756 = vmax.f32 %v724, 0.0
        %v757 = vmax.f32 %v725, 0.0
        %v758 = vmax.f32 %v726, 0.0
        %v759 = vmax.f32 %v727, 0.0
        %v760 = vmax.f32 %v728, 0.0
        %v761 = vmax.f32 %v729, 0.0
        %v762 = vmax.f32 %v730, 0.0
        %v763 = vmax.f32 %v731, 0.0
        %v764 = vmax.f32 %v732, 0.0
        %v765 = vmax.f32 %v733, 0.0
        %v766 = vmax.f32 %v734, 0.0
        %v767 = vmax.f32 %v735, 0.0
        %v768 = vmax.f32 %v736, 0.0
        %v769 = vmax.f32 %v737, 0.0
        %v770 = vmax.f32 %v738, 0.0
        %v771 = vmax.f32 %v739, 0.0
        %v772 = vmax.f32 %v740, 0.0
        %v773 = vmax.f32 %v741, 0.0
        %v774 = vmax.f32 %v742, 0.0
        %v775 = vmax.f32 %v743, 0.0
        %v776 = vpack.c.bf16 %v745, %v744
        %v777 = vpack.c.bf16 %v747, %v746
        %v778 = vpack.c.bf16 %v749, %v748
        %v779 = vpack.c.bf16 %v751, %v750
        %v780 = vpack.c.bf16 %v753, %v752
        %v781 = vpack.c.bf16 %v755, %v754
        %v782 = vpack.c.bf16 %v757, %v756
        %v783 = vpack.c.bf16 %v759, %v758
        %v784 = vpack.c.bf16 %v761, %v760
        %v785 = vpack.c.bf16 %v763, %v762
        %v786 = vpack.c.bf16 %v765, %v764
        %v787 = vpack.c.bf16 %v767, %v766
        %v788 = vpack.c.bf16 %v769, %v768
        %v789 = vpack.c.bf16 %v771, %v770
        %v790 = vpack.c.bf16 %v773, %v772
        %v791 = vpack.c.bf16 %v775, %v774
        %v808 = vunpack.c.l.b16 %v776
        %v809 = vunpack.c.h.b16 %v776
        %v810 = vunpack.c.l.b16 %v777
        %v811 = vunpack.c.h.b16 %v777
        %v812 = vunpack.c.l.b16 %v778
        %v813 = vunpack.c.h.b16 %v778
        %v814 = vunpack.c.l.b16 %v779
        %v815 = vunpack.c.h.b16 %v779
        %v816 = vunpack.c.l.b16 %v780
        %v817 = vunpack.c.h.b16 %v780
        %v818 = vunpack.c.l.b16 %v781
        %v819 = vunpack.c.h.b16 %v781
        %v820 = vunpack.c.l.b16 %v782
        %v821 = vunpack.c.h.b16 %v782
        %v822 = vunpack.c.l.b16 %v783
        %v823 = vunpack.c.h.b16 %v783
        %v824 = vunpack.c.l.b16 %v784
        %v825 = vunpack.c.h.b16 %v784
        %v826 = vunpack.c.l.b16 %v785
        %v827 = vunpack.c.h.b16 %v785
        %v828 = vunpack.c.l.b16 %v786
        %v829 = vunpack.c.h.b16 %v786
        %v830 = vunpack.c.l.b16 %v787
        %v831 = vunpack.c.h.b16 %v787
        %v832 = vunpack.c.l.b16 %v788
        %v833 = vunpack.c.h.b16 %v788
        %v834 = vunpack.c.l.b16 %v789
        %v835 = vunpack.c.h.b16 %v789
        %v836 = vunpack.c.l.b16 %v790
        %v837 = vunpack.c.h.b16 %v790
        %v838 = vunpack.c.l.b16 %v791
        %v839 = vunpack.c.h.b16 %v791
        %v840 = vpack.c.b16 %v808, %v808
        %v841 = vpack.c.b16 %v809, %v809
        %v842 = vpack.c.b16 %v810, %v810
        %v843 = vpack.c.b16 %v811, %v811
        %v844 = vpack.c.b16 %v812, %v812
        %v845 = vpack.c.b16 %v813, %v813
        %v846 = vpack.c.b16 %v814, %v814
        %v847 = vpack.c.b16 %v815, %v815
        %v848 = vpack.c.b16 %v816, %v816
        %v849 = vpack.c.b16 %v817, %v817
        %v850 = vpack.c.b16 %v818, %v818
        %v851 = vpack.c.b16 %v819, %v819
        %v852 = vpack.c.b16 %v820, %v820
        %v853 = vpack.c.b16 %v821, %v821
        %v854 = vpack.c.b16 %v822, %v822
        %v855 = vpack.c.b16 %v823, %v823
        %v856 = vpack.c.b16 %v824, %v824
        %v857 = vpack.c.b16 %v825, %v825
        %v858 = vpack.c.b16 %v826, %v826
        %v859 = vpack.c.b16 %v827, %v827
        %v860 = vpack.c.b16 %v828, %v828
        %v861 = vpack.c.b16 %v829, %v829
        %v862 = vpack.c.b16 %v830, %v830
        %v863 = vpack.c.b16 %v831, %v831
        %v864 = vpack.c.b16 %v832, %v832
        %v865 = vpack.c.b16 %v833, %v833
        %v866 = vpack.c.b16 %v834, %v834
        %v867 = vpack.c.b16 %v835, %v835
        %v868 = vpack.c.b16 %v836, %v836
        %v869 = vpack.c.b16 %v837, %v837
        %v870 = vpack.c.b16 %v838, %v838
        %v871 = vpack.c.b16 %v839, %v839
        %904 = vst [vmem:[%s198] sm:$0xf] %v840
        %905 = vst [vmem:[%s198 + $0x4] sm:$0xf] %v841
        %906 = vst [vmem:[%s198 + $0x8] sm:$0xf] %v842
        %907 = vst [vmem:[%s198 + $0xc] sm:$0xf] %v843
        %908 = vst [vmem:[%s198 + $0x10] sm:$0xf] %v844
        %909 = vst [vmem:[%s198 + $0x14] sm:$0xf] %v845
        %910 = vst [vmem:[%s198 + $0x18] sm:$0xf] %v846
        %911 = vst [vmem:[%s198 + $0x1c] sm:$0xf] %v847
        %912 = vst [vmem:[%s198 + $0x20] sm:$0xf] %v848
        %913 = vst [vmem:[%s198 + $0x24] sm:$0xf] %v849
        %914 = vst [vmem:[%s198 + $0x28] sm:$0xf] %v850
        %915 = vst [vmem:[%s198 + $0x2c] sm:$0xf] %v851
        %916 = vst [vmem:[%s198 + $0x30] sm:$0xf] %v852
        %917 = vst [vmem:[%s198 + $0x34] sm:$0xf] %v853
        %918 = vst [vmem:[%s198 + $0x38] sm:$0xf] %v854
        %919 = vst [vmem:[%s198 + $0x3c] sm:$0xf] %v855
        %920 = vst [vmem:[%s198 + $0x40] sm:$0xf] %v856
        %921 = vst [vmem:[%s198 + $0x44] sm:$0xf] %v857
        %922 = vst [vmem:[%s198 + $0x48] sm:$0xf] %v858
        %923 = vst [vmem:[%s198 + $0x4c] sm:$0xf] %v859
        %924 = vst [vmem:[%s198 + $0x50] sm:$0xf] %v860
        %925 = vst [vmem:[%s198 + $0x54] sm:$0xf] %v861
        %926 = vst [vmem:[%s198 + $0x58] sm:$0xf] %v862
        %927 = vst [vmem:[%s198 + $0x5c] sm:$0xf] %v863
        %928 = vst [vmem:[%s198 + $0x60] sm:$0xf] %v864
        %929 = vst [vmem:[%s198 + $0x64] sm:$0xf] %v865
        %930 = vst [vmem:[%s198 + $0x68] sm:$0xf] %v866
        %931 = vst [vmem:[%s198 + $0x6c] sm:$0xf] %v867
        %932 = vst [vmem:[%s198 + $0x70] sm:$0xf] %v868
        %933 = vst [vmem:[%s198 + $0x74] sm:$0xf] %v869
        %934 = vst [vmem:[%s198 + $0x78] sm:$0xf] %v870
        %935 = vst [vmem:[%s198 + $0x7c] sm:$0xf] %v871
      $region40: #{reduction_b_forward.3} parent=31 // pred_fallthru
        _
      %s936 = smul.u32 32, %s18
      %p937 = scmp.lt.s32.totalorder %s936, 63
      %s938 = scalar_select %p937, %s936, 63
      %s939 = smul.addr %s938, 4
      %s940 = scalar_lea.vmem %s3, %s939
      // Predicated region
      $region41: #{reduction_b_forward.3} parent=31 // pred_check
        %p941 = pneg %p114
      $region42: #{reduction_b_forward.3} parent=31 // pred_check_branch
        %943 = sbr.rel (%p941) target = $region44
      $region43: #{reduction_b_forward.3} parent=31 // pred_region
        %s944 = smul.u32 32, %s18
      $region44: #{reduction_b_forward.3} parent=31 // pred_fallthru
        _
    $region32: #{reduction_b_forward.3} parent=5 // pred_fallthru
      _
    %p945 = scmp.le.s32.totalorder 2, %s9
    // Predicated region
    $region45: #{reduction_b_forward.3} parent=5 // pred_check
      %p946 = pneg %p945
    $region46: #{reduction_b_forward.3} parent=5 // pred_check_branch
      %948 = sbr.rel (%p946) target = $region48
    $region47: #{reduction_b_forward.3} parent=5 // pred_region
      %s949 = ssub.s32 %s9, 2
      // Predicated region
      $region49: #{reduction_b_forward.3} parent=47 // pred_check
        %p950 = pneg %p120
      $region50: #{reduction_b_forward.3} parent=47 // pred_check_branch
        %952 = sbr.rel (%p950) target = $region52
      $region51: #{reduction_b_forward.3} parent=47 // pred_region
        %s953 = smul.u32 32, %s20
        %p954 = scmp.lt.s32.totalorder %s953, 63
        %s955 = scalar_select %p954, %s953, 63
        %s956 = smul.addr %s955, 4
        %s957 = scalar_lea.vmem %s3, %s956
      $region52: #{reduction_b_forward.3} parent=47 // pred_fallthru
        _
    $region48: #{reduction_b_forward.3} parent=5 // pred_fallthru
      _
  $region6: #{reduction_b_forward.3} parent=0 // loop_footer
    %s13 = sadd.s32 1, %s9
  $region7: #{reduction_b_forward.3} parent=0 // loop_footer_branch
    %8 = sbr.rel target = $region3
  $region8: #{reduction_b_forward.3} parent=0 // loop_exit
    _

// kernel: reduction_b_forward.5
$region0: #{reduction_b_forward.5}
  #allocation0 [shape = 'u32[]', space=smem, size = 0x4, offset = 0x4, fixed_abs, tag = 'smem constant byte address 0x4 - core index']
  #allocation1 [shape = 'u32[144,128]{1,0:T(1,128)}', space=vmem, size = 0x12000, scoped, tag = 'internal scratch']
  #allocation2 [shape = 'f32[128,128]{1,0:T(8,128)}', space=vmem, size = 0x10000, scoped, tag = 'scratch operand']
  %s0 = inlined_call_operand.vmem [shape: bf16[3,128,21], index: 0, kind: input, shape index: {}]
  %s1 = inlined_call_operand.vmem [shape: bf16[3,21,128], index: 1, kind: input, shape index: {}]
  %s2 = inlined_call_operand.vmem [shape: f32[1,128], index: 2, kind: input, shape index: {}]
  %s3 = inlined_call_operand.vmem [shape: bf16[128,128], index: 3, kind: output, shape index: {}]
  %s4 = sld [smem:[#allocation0]]
  $region53: #{reduction_b_forward.5} parent=0
    _
  %s6 = ssub.s32 1, %s4
  %s7 = scalar_select 0, %s6, %s4
  loop: start=0, step=1, limit=5
  $region2: #{reduction_b_forward.5} parent=0 // loop_pre_header
    _
  $region3: #{reduction_b_forward.5} parent=0 // loop_header
    %s9 = sphi 0, %s13
    %p10 = scmp.ge.s32.totalorder %s9, 5
    %s16 = sphi 0, %s28
    %s17 = sphi 0, %s24
    %s18 = sphi 0, %s16
    %s19 = sphi 0, %s17
    %s20 = sphi 0, %s18
    %s21 = sphi 0, %s19
    %s33 = sphi 0, %s35
    %s36 = sphi 0, %s33
    %s37 = sphi 0, %s36
    %s53 = sphi 0, %s37
    %s57 = sphi 0, %s57
    %s59 = sphi 0, %s57
    %s60 = sphi 0, %s59
    %s74 = sphi 0, %s60
    %s78 = sphi 0, %s78
    %s80 = sphi 0, %s78
    %s81 = sphi 0, %s80
    %s95 = sphi 0, %s81
    %s101 = sphi 0, %s103
    %s104 = sphi 0, %s101
    %s105 = sphi 0, %s104
    %s121 = sphi 0, %s105
  $region4: #{reduction_b_forward.5} parent=0 // loop_header_branch
    %12 = sbr.rel (%p10) target = $region8
  $region5: #{reduction_b_forward.5} parent=0 // loop_body
    %s14 = ssub.s32 %s9, 1
    %s15 = ssub.s32 %s9, 2
    %s22 = sadd.s32 1, %s17
    %p23 = scmp.ge.s32.totalorder %s22, 3
    %s24 = scalar_select %p23, 0, %s22
    %s25 = sadd.s32 1, %s16
    %s26 = scalar_select %p23, %s25, %s16
    %p27 = scmp.ge.s32.totalorder %s26, 1
    %s28 = scalar_select %p27, 0, %s26
    %s29 = ssub.s32 %s17, %s24
    %s30 = ssub.s32 %s16, %s28
    %s31 = sor.u32 %s29, %s30
    %p32 = scmp.eq.s32.totalorder %s31, 0
    %s34 = sadd.s32 %s33, 1
    %s35 = scalar_select %p32, %s33, %s34
    %p38 = pneg %p32
    %p39 = scmp.eq.s32.totalorder %s9, 2
    %p40 = por %p38, %p39
    %p41 = scmp.ne.s32.totalorder %s33, %s36
    %p42 = scmp.eq.s32.totalorder %s9, 0
    %p43 = por %p41, %p42
    %p44 = scmp.ne.s32.totalorder %s33, %s36
    %p45 = scmp.eq.s32.totalorder %s14, 2
    %p46 = por %p44, %p45
    %p47 = scmp.ne.s32.totalorder %s36, %s37
    %p48 = scmp.eq.s32.totalorder %s14, 0
    %p49 = por %p47, %p48
    %p50 = scmp.ne.s32.totalorder %s36, %s37
    %p51 = scmp.eq.s32.totalorder %s15, 2
    %p52 = por %p50, %p51
    %p54 = scmp.ne.s32.totalorder %s37, %s53
    %p55 = scmp.eq.s32.totalorder %s15, 0
    %p56 = por %p54, %p55
    %s58 = sadd.s32 %s57, 1
    %p61 = scmp.eq.s32.totalorder %s9, 2
    %p62 = scmp.ne.s32.totalorder %s57, %s59
    %p63 = scmp.eq.s32.totalorder %s9, 0
    %p64 = por %p62, %p63
    %p65 = scmp.ne.s32.totalorder %s57, %s59
    %p66 = scmp.eq.s32.totalorder %s14, 2
    %p67 = por %p65, %p66
    %p68 = scmp.ne.s32.totalorder %s59, %s60
    %p69 = scmp.eq.s32.totalorder %s14, 0
    %p70 = por %p68, %p69
    %p71 = scmp.ne.s32.totalorder %s59, %s60
    %p72 = scmp.eq.s32.totalorder %s15, 2
    %p73 = por %p71, %p72
    %p75 = scmp.ne.s32.totalorder %s60, %s74
    %p76 = scmp.eq.s32.totalorder %s15, 0
    %p77 = por %p75, %p76
    %s79 = sadd.s32 %s78, 1
    %p82 = scmp.eq.s32.totalorder %s9, 2
    %p83 = scmp.ne.s32.totalorder %s78, %s80
    %p84 = scmp.eq.s32.totalorder %s9, 0
    %p85 = por %p83, %p84
    %p86 = scmp.ne.s32.totalorder %s78, %s80
    %p87 = scmp.eq.s32.totalorder %s14, 2
    %p88 = por %p86, %p87
    %p89 = scmp.ne.s32.totalorder %s80, %s81
    %p90 = scmp.eq.s32.totalorder %s14, 0
    %p91 = por %p89, %p90
    %p92 = scmp.ne.s32.totalorder %s80, %s81
    %p93 = scmp.eq.s32.totalorder %s15, 2
    %p94 = por %p92, %p93
    %p96 = scmp.ne.s32.totalorder %s81, %s95
    %p97 = scmp.eq.s32.totalorder %s15, 0
    %p98 = por %p96, %p97
    %s99 = ssub.s32 %s16, %s28
    %p100 = scmp.eq.s32.totalorder %s99, 0
    %s102 = sadd.s32 %s101, 1
    %s103 = scalar_select %p100, %s101, %s102
    %p106 = pneg %p100
    %p107 = scmp.eq.s32.totalorder %s9, 2
    %p108 = por %p106, %p107
    %p109 = scmp.ne.s32.totalorder %s101, %s104
    %p110 = scmp.eq.s32.totalorder %s9, 0
    %p111 = por %p109, %p110
    %p112 = scmp.ne.s32.totalorder %s101, %s104
    %p113 = scmp.eq.s32.totalorder %s14, 2
    %p114 = por %p112, %p113
    %p115 = scmp.ne.s32.totalorder %s104, %s105
    %p116 = scmp.eq.s32.totalorder %s14, 0
    %p117 = por %p115, %p116
    %p118 = scmp.ne.s32.totalorder %s104, %s105
    %p119 = scmp.eq.s32.totalorder %s15, 2
    %p120 = por %p118, %p119
    %p122 = scmp.ne.s32.totalorder %s105, %s121
    %p123 = scmp.eq.s32.totalorder %s15, 0
    %p124 = por %p122, %p123
    %p125 = scmp.le.s32.totalorder 1, %s9
    %p126 = scmp.lt.s32.totalorder %s9, 4
    %p127 = pnand %p125, %p126
    %p128 = pneg %p127
    // Predicated region
    $region9: #{reduction_b_forward.5} parent=5 // pred_check
      _
    $region10: #{reduction_b_forward.5} parent=5 // pred_check_branch
      %130 = sbr.rel (%p127) target = $region12
    $region11: #{reduction_b_forward.5} parent=5 // pred_region
      %s131 = ssub.s32 %s9, 1
      // Predicated region
      $region13: #{reduction_b_forward.5} parent=11 // pred_check
        %p132 = pneg %p70
      $region14: #{reduction_b_forward.5} parent=11 // pred_check_branch
        %134 = sbr.rel (%p132) target = $region16
      $region15: #{reduction_b_forward.5} parent=11 // pred_region
        _
      $region16: #{reduction_b_forward.5} parent=11 // pred_fallthru
        _
      // Predicated region
      $region17: #{reduction_b_forward.5} parent=11 // pred_check
        %p135 = pneg %p91
      $region18: #{reduction_b_forward.5} parent=11 // pred_check_branch
        %137 = sbr.rel (%p135) target = $region20
      $region19: #{reduction_b_forward.5} parent=11 // pred_region
        _
      $region20: #{reduction_b_forward.5} parent=11 // pred_fallthru
        _
    $region12: #{reduction_b_forward.5} parent=5 // pred_fallthru
      _
    %p138 = scmp.lt.s32.totalorder %s9, 3
    // Predicated region
    $region21: #{reduction_b_forward.5} parent=5 // pred_check
      %p139 = pneg %p138
    $region22: #{reduction_b_forward.5} parent=5 // pred_check_branch
      %141 = sbr.rel (%p139) target = $region24
    $region23: #{reduction_b_forward.5} parent=5 // pred_region
      // Predicated region
      $region25: #{reduction_b_forward.5} parent=23 // pred_check
        %p142 = pneg %p43
      $region26: #{reduction_b_forward.5} parent=23 // pred_check_branch
        %144 = sbr.rel (%p142) target = $region28
      $region27: #{reduction_b_forward.5} parent=23 // pred_region
        %s145 = smul.u32 16, %s16
        %p146 = scmp.lt.s32.totalorder %s17, 2
        %s147 = scalar_select %p146, %s17, 2
        %p148 = scmp.lt.s32.totalorder %s145, 15
        %s149 = scalar_select %p148, %s145, 15
        %s150 = smul.addr %s147, 16
        %s151 = sadd.s32 %s149, %s150
        %s152 = smul.addr %s151, 4
        %s153 = scalar_lea.vmem %s0, %s152
        %s154 = smul.u32 16, %s16
      $region28: #{reduction_b_forward.5} parent=23 // pred_fallthru
        _
    $region24: #{reduction_b_forward.5} parent=5 // pred_fallthru
      _
    %p155 = scmp.le.s32.totalorder 1, %s9
    %p156 = scmp.lt.s32.totalorder %s9, 4
    %p157 = pnand %p155, %p156
    %p158 = pneg %p157
    // Predicated region
    $region29: #{reduction_b_forward.5} parent=5 // pred_check
      _
    $region30: #{reduction_b_forward.5} parent=5 // pred_check_branch
      %160 = sbr.rel (%p157) target = $region32
    $region31: #{reduction_b_forward.5} parent=5 // pred_region
      %s161 = ssub.s32 %s9, 1
      %s162 = smul.u32 16, %s18
      %p163 = scmp.lt.s32.totalorder %s19, 2
      %s164 = scalar_select %p163, %s19, 2
      %p165 = scmp.lt.s32.totalorder %s162, 15
      %s166 = scalar_select %p165, %s162, 15
      %s167 = smul.addr %s164, 16
      %s168 = sadd.s32 %s166, %s167
      %s169 = smul.addr %s168, 4
      %s170 = scalar_lea.vmem %s0, %s169
      %p171 = pneg %p49
      %p172 = pneg %p46
      %p173 = pneg %p70
      %p174 = pneg %p67
      %p175 = pneg %p91
      %p176 = pneg %p88
      %p177 = pneg %p117
      %p178 = pneg %p114
      %s179 = smul.u32 16, %s18
      %p180 = scmp.lt.s32.totalorder %s179, 15
      %s181 = scalar_select %p180, %s179, 15
      %s182 = smul.addr %s181, 4
      %s183 = scalar_lea.vmem %s3, %s182
      %s184 = smul.u32 16, %s18
      %p185 = scmp.lt.s32.totalorder %s19, 2
      %s186 = scalar_select %p185, %s19, 2
      %p187 = scmp.lt.s32.totalorder %s184, 15
      %s188 = scalar_select %p187, %s184, 15
      %s189 = smul.addr %s186, 16
      %s190 = sadd.s32 %s188, %s189
      %s191 = smul.addr %s190, 4
      %s192 = scalar_lea.vmem %s0, %s191
      %s193 = smul.u32 16, %s18
      %s194 = smul.u32 16, %s18
      %p195 = scmp.lt.s32.totalorder %s194, 15
      %s196 = scalar_select %p195, %s194, 15
      %s197 = smul.addr %s196, 4
      %s198 = scalar_lea.vmem %s3, %s197
      %s199 = smul.u32 16, %s18
      %p201 = scmp.eq.s32.totalorder %s19, 0
      // Predicated region
      $region33: #{reduction_b_forward.5} parent=31 // pred_check
        %p202 = pneg %p201
      $region34: #{reduction_b_forward.5} parent=31 // pred_check_branch
        %204 = sbr.rel (%p202) target = $region36
      $region35: #{reduction_b_forward.5} parent=31 // pred_region
        %205 = vst [vmem:[#allocation2] sm:$0xff] 0.0
        %206 = vst [vmem:[#allocation2 + $0x8] sm:$0xff] 0.0
        %207 = vst [vmem:[#allocation2 + $0x10] sm:$0xff] 0.0
        %208 = vst [vmem:[#allocation2 + $0x18] sm:$0xff] 0.0
        %209 = vst [vmem:[#allocation2 + $0x20] sm:$0xff] 0.0
        %210 = vst [vmem:[#allocation2 + $0x28] sm:$0xff] 0.0
        %211 = vst [vmem:[#allocation2 + $0x30] sm:$0xff] 0.0
        %212 = vst [vmem:[#allocation2 + $0x38] sm:$0xff] 0.0
        %213 = vst [vmem:[#allocation2 + $0x40] sm:$0xff] 0.0
        %214 = vst [vmem:[#allocation2 + $0x48] sm:$0xff] 0.0
        %215 = vst [vmem:[#allocation2 + $0x50] sm:$0xff] 0.0
        %216 = vst [vmem:[#allocation2 + $0x58] sm:$0xff] 0.0
        %217 = vst [vmem:[#allocation2 + $0x60] sm:$0xff] 0.0
        %218 = vst [vmem:[#allocation2 + $0x68] sm:$0xff] 0.0
        %219 = vst [vmem:[#allocation2 + $0x70] sm:$0xff] 0.0
        %220 = vst [vmem:[#allocation2 + $0x78] sm:$0xff] 0.0
      $region36: #{reduction_b_forward.5} parent=31 // pred_fallthru
        _
      %v221 = vld [vmem:[#allocation2] sm:$0xff]
      %v222 = vld [vmem:[#allocation2 + $0x8] sm:$0xff]
      %v223 = vld [vmem:[#allocation2 + $0x10] sm:$0xff]
      %v224 = vld [vmem:[#allocation2 + $0x18] sm:$0xff]
      %v225 = vld [vmem:[#allocation2 + $0x20] sm:$0xff]
      %v226 = vld [vmem:[#allocation2 + $0x28] sm:$0xff]
      %v227 = vld [vmem:[#allocation2 + $0x30] sm:$0xff]
      %v228 = vld [vmem:[#allocation2 + $0x38] sm:$0xff]
      %v229 = vld [vmem:[#allocation2 + $0x40] sm:$0xff]
      %v230 = vld [vmem:[#allocation2 + $0x48] sm:$0xff]
      %v231 = vld [vmem:[#allocation2 + $0x50] sm:$0xff]
      %v232 = vld [vmem:[#allocation2 + $0x58] sm:$0xff]
      %v233 = vld [vmem:[#allocation2 + $0x60] sm:$0xff]
      %v234 = vld [vmem:[#allocation2 + $0x68] sm:$0xff]
      %v235 = vld [vmem:[#allocation2 + $0x70] sm:$0xff]
      %v236 = vld [vmem:[#allocation2 + $0x78] sm:$0xff]
      %v237 = vld [vmem:[%s192] sm:$0xf]
      %v238 = vld [vmem:[%s192 + $0x4] sm:$0xf]
      %v239 = vld [vmem:[%s192 + $0x8] sm:$0xf]
      %v240 = vld [vmem:[%s192 + $0xc] sm:$0xf]
      %v241 = vld [vmem:[%s192 + $0x10] sm:$0xf]
      %v242 = vld [vmem:[%s192 + $0x14] sm:$0xf]
      %v243 = vld [vmem:[%s192 + $0x18] sm:$0xf]
      %v244 = vld [vmem:[%s192 + $0x1c] sm:$0xf]
      %v245 = vld [vmem:[%s192 + $0x20] sm:$0xf]
      %v246 = vld [vmem:[%s192 + $0x24] sm:$0xf]
      %v247 = vld [vmem:[%s192 + $0x28] sm:$0xf]
      %v248 = vld [vmem:[%s192 + $0x2c] sm:$0xf]
      %v249 = vld [vmem:[%s192 + $0x30] sm:$0xf]
      %v250 = vld [vmem:[%s192 + $0x34] sm:$0xf]
      %v251 = vld [vmem:[%s192 + $0x38] sm:$0xf]
      %v252 = vld [vmem:[%s192 + $0x3c] sm:$0xf]
      %s253 = smul.u32 %s19, 3
      %s254 = smul.addr %s253, 4
      %s255 = scalar_lea.vmem %s1, %s254
      %v256 = vld [vmem:[%s255] sm:$0xf]
      %v257 = vld [vmem:[%s255 + $0x4] sm:$0xf]
      %v258 = vld [vmem:[%s255 + $0x8] sm:$0x7]
      %v275 = vunpack.c.l.b16 %v237
      %v276 = vunpack.c.l.b16 %v238
      %v277 = vunpack.c.l.b16 %v239
      %v278 = vunpack.c.l.b16 %v240
      %v279 = vunpack.c.l.b16 %v241
      %v280 = vunpack.c.l.b16 %v242
      %v281 = vunpack.c.l.b16 %v243
      %v282 = vunpack.c.l.b16 %v244
      %v283 = vunpack.c.l.b16 %v245
      %v284 = vunpack.c.l.b16 %v246
      %v285 = vunpack.c.l.b16 %v247
      %v286 = vunpack.c.l.b16 %v248
      %v287 = vunpack.c.l.b16 %v249
      %v288 = vunpack.c.l.b16 %v250
      %v289 = vunpack.c.l.b16 %v251
      %v290 = vunpack.c.l.b16 %v252
      %v291 = vpack.c.b16 %v276, %v275
      %v292 = vpack.c.b16 %v278, %v277
      %v293 = vpack.c.b16 %v280, %v279
      %v294 = vpack.c.b16 %v282, %v281
      %v295 = vpack.c.b16 %v284, %v283
      %v296 = vpack.c.b16 %v286, %v285
      %v297 = vpack.c.b16 %v288, %v287
      %v298 = vpack.c.b16 %v290, %v289
      %v302 = vunpack.c.l.b16 %v256
      %v303 = vunpack.c.l.b16 %v257
      %v304 = vunpack.c.l.b16 %v258
      %v305 = vpack.c.b16 %v303, %v302
      %v306 = vpack.c.b16 %v304, %v304
      %vm308 = vcmask 171008
      %v310 = vsel %vm308, %v291, 0
      %v313 = vsel %vm308, %v292, 0
      %v316 = vsel %vm308, %v293, 0
      %v319 = vsel %vm308, %v294, 0
      %v322 = vsel %vm308, %v295, 0
      %v325 = vsel %vm308, %v296, 0
      %v328 = vsel %vm308, %v297, 0
      %v331 = vsel %vm308, %v298, 0
      %vm333 = vcmask 1041408
      %vm334 = vcmask 1042432
      %v335 = vsel %vm333, 4294967295, 65535
      %v336 = vsel %vm334, %v335, 0
      %v338 = vand.u32 %v306, %v336
      %340 = vmatprep.subr.bf16.mxu0 0
      %341 = vmatpush1.bf16.msra.mxu0 %v305
      %342 = vmatprep.subr.bf16.mxu0 0
      %343 = vmatpush1.bf16.msra.mxu0 %v338
      %344 = vmatprep.subr.bf16.mxu0 0
      %345 = vmatpush1.bf16.msra.mxu0 0
      %346 = vmatprep.subr.bf16.mxu0 0
      %347 = vmatpush1.bf16.msra.mxu0 0
      %348 = vmatprep.subr.bf16.mxu0 0
      %349 = vmatpush1.bf16.msra.mxu0 0
      %350 = vmatprep.subr.bf16.mxu0 0
      %351 = vmatpush1.bf16.msra.mxu0 0
      %352 = vmatprep.subr.bf16.mxu0 0
      %353 = vmatpush1.bf16.msra.mxu0 0
      %354 = vmatprep.subr.bf16.mxu0 0
      %355 = vmatpush1.bf16.msra.mxu0 0
      %356 = vmatprep.subr.bf16.mxu0 0
      %357 = vmatpush1.bf16.msra.mxu0 0
      %358 = vmatprep.subr.bf16.mxu0 0
      %359 = vmatpush1.bf16.msra.mxu0 0
      %360 = vmatprep.subr.bf16.mxu0 0
      %361 = vmatpush1.bf16.msra.mxu0 0
      %362 = vmatprep.subr.bf16.mxu0 0
      %363 = vmatpush1.bf16.msra.mxu0 0
      %364 = vmatprep.subr.bf16.mxu0 0
      %365 = vmatpush1.bf16.msra.mxu0 0
      %366 = vmatprep.subr.bf16.mxu0 0
      %367 = vmatpush1.bf16.msra.mxu0 0
      %368 = vmatprep.subr.bf16.mxu0 0
      %369 = vmatpush1.bf16.msra.mxu0 0
      %370 = vmatprep.subr.bf16.mxu0 0
      %371 = vmatpush1.bf16.msra.mxu0 0
      %372 = vmatprep.mubr.bf16.mxu0 0
      %373 = vmatmul.mubr.bf16.gmra.mrb[0].mxu0 %v310
      %v374 = vpop.f32.mrb[0].mxu0
      %v375 = vadd.f32 0.0, %v374
      %v376 = vpop.f32.mrb[0].mxu0
      %v377 = vpop.f32.mrb[0].mxu0
      %v378 = vadd.f32 0.0, %v377
      %v379 = vpop.f32.mrb[0].mxu0
      %380 = vmatprep.mubr.bf16.mxu0 0
      %381 = vmatmul.mubr.bf16.gmra.mrb[0].mxu0 %v313
      %v382 = vpop.f32.mrb[0].mxu0
      %v383 = vadd.f32 0.0, %v382
      %v384 = vpop.f32.mrb[0].mxu0
      %v385 = vpop.f32.mrb[0].mxu0
      %v386 = vadd.f32 0.0, %v385
      %v387 = vpop.f32.mrb[0].mxu0
      %388 = vmatprep.mubr.bf16.mxu0 0
      %389 = vmatmul.mubr.bf16.gmra.mrb[0].mxu0 %v316
      %v390 = vpop.f32.mrb[0].mxu0
      %v391 = vadd.f32 0.0, %v390
      %v392 = vpop.f32.mrb[0].mxu0
      %v393 = vpop.f32.mrb[0].mxu0
      %v394 = vadd.f32 0.0, %v393
      %v395 = vpop.f32.mrb[0].mxu0
      %396 = vmatprep.mubr.bf16.mxu0 0
      %397 = vmatmul.mubr.bf16.gmra.mrb[0].mxu0 %v319
      %v398 = vpop.f32.mrb[0].mxu0
      %v399 = vadd.f32 0.0, %v398
      %v400 = vpop.f32.mrb[0].mxu0
      %v401 = vpop.f32.mrb[0].mxu0
      %v402 = vadd.f32 0.0, %v401
      %v403 = vpop.f32.mrb[0].mxu0
      %404 = vmatprep.mubr.bf16.mxu0 0
      %405 = vmatmul.mubr.bf16.gmra.mrb[0].mxu0 %v322
      %v406 = vpop.f32.mrb[0].mxu0
      %v407 = vadd.f32 0.0, %v406
      %v408 = vpop.f32.mrb[0].mxu0
      %v409 = vpop.f32.mrb[0].mxu0
      %v410 = vadd.f32 0.0, %v409
      %v411 = vpop.f32.mrb[0].mxu0
      %412 = vmatprep.mubr.bf16.mxu0 0
      %413 = vmatmul.mubr.bf16.gmra.mrb[0].mxu0 %v325
      %v414 = vpop.f32.mrb[0].mxu0
      %v415 = vadd.f32 0.0, %v414
      %v416 = vpop.f32.mrb[0].mxu0
      %v417 = vpop.f32.mrb[0].mxu0
      %v418 = vadd.f32 0.0, %v417
      %v419 = vpop.f32.mrb[0].mxu0
      %420 = vmatprep.mubr.bf16.mxu0 0
      %421 = vmatmul.mubr.bf16.gmra.mrb[0].mxu0 %v328
      %v422 = vpop.f32.mrb[0].mxu0
      %v423 = vadd.f32 0.0, %v422
      %v424 = vpop.f32.mrb[0].mxu0
      %v425 = vpop.f32.mrb[0].mxu0
      %v426 = vadd.f32 0.0, %v425
      %v427 = vpop.f32.mrb[0].mxu0
      %428 = vmatprep.mubr.bf16.mxu0 0
      %429 = vmatmul.mubr.bf16.gmra.mrb[0].mxu0 %v331
      %v430 = vpop.f32.mrb[0].mxu0
      %v431 = vadd.f32 0.0, %v430
      %v432 = vpop.f32.mrb[0].mxu0
      %v433 = vpop.f32.mrb[0].mxu0
      %v434 = vadd.f32 0.0, %v433
      %v435 = vpop.f32.mrb[0].mxu0
      %436 = vdwg.mxu0
      %v437 = vadd.f32 %v221, %v375
      %v438 = vadd.f32 %v222, %v378
      %v439 = vadd.f32 %v223, %v383
      %v440 = vadd.f32 %v224, %v386
      %v441 = vadd.f32 %v225, %v391
      %v442 = vadd.f32 %v226, %v394
      %v443 = vadd.f32 %v227, %v399
      %v444 = vadd.f32 %v228, %v402
      %v445 = vadd.f32 %v229, %v407
      %v446 = vadd.f32 %v230, %v410
      %v447 = vadd.f32 %v231, %v415
      %v448 = vadd.f32 %v232, %v418
      %v449 = vadd.f32 %v233, %v423
      %v450 = vadd.f32 %v234, %v426
      %v451 = vadd.f32 %v235, %v431
      %v452 = vadd.f32 %v236, %v434
      %453 = vst [vmem:[#allocation2] sm:$0xff] %v437
      %454 = vst [vmem:[#allocation2 + $0x8] sm:$0xff] %v438
      %455 = vst [vmem:[#allocation2 + $0x10] sm:$0xff] %v439
      %456 = vst [vmem:[#allocation2 + $0x18] sm:$0xff] %v440
      %457 = vst [vmem:[#allocation2 + $0x20] sm:$0xff] %v441
      %458 = vst [vmem:[#allocation2 + $0x28] sm:$0xff] %v442
      %459 = vst [vmem:[#allocation2 + $0x30] sm:$0xff] %v443
      %460 = vst [vmem:[#allocation2 + $0x38] sm:$0xff] %v444
      %461 = vst [vmem:[#allocation2 + $0x40] sm:$0xff] %v445
      %462 = vst [vmem:[#allocation2 + $0x48] sm:$0xff] %v446
      %463 = vst [vmem:[#allocation2 + $0x50] sm:$0xff] %v447
      %464 = vst [vmem:[#allocation2 + $0x58] sm:$0xff] %v448
      %465 = vst [vmem:[#allocation2 + $0x60] sm:$0xff] %v449
      %466 = vst [vmem:[#allocation2 + $0x68] sm:$0xff] %v450
      %467 = vst [vmem:[#allocation2 + $0x70] sm:$0xff] %v451
      %468 = vst [vmem:[#allocation2 + $0x78] sm:$0xff] %v452
      %p469 = scmp.eq.s32.totalorder %s19, 2
      // Predicated region
      $region37: #{reduction_b_forward.5} parent=31 // pred_check
        %p470 = pneg %p469
      $region38: #{reduction_b_forward.5} parent=31 // pred_check_branch
        %472 = sbr.rel (%p470) target = $region40
      $region39: #{reduction_b_forward.5} parent=31 // pred_region
        %v473 = vld [vmem:[#allocation2] sm:$0xff]
        %v474 = vld [vmem:[#allocation2 + $0x8] sm:$0xff]
        %v475 = vld [vmem:[#allocation2 + $0x10] sm:$0xff]
        %v476 = vld [vmem:[#allocation2 + $0x18] sm:$0xff]
        %v477 = vld [vmem:[#allocation2 + $0x20] sm:$0xff]
        %v478 = vld [vmem:[#allocation2 + $0x28] sm:$0xff]
        %v479 = vld [vmem:[#allocation2 + $0x30] sm:$0xff]
        %v480 = vld [vmem:[#allocation2 + $0x38] sm:$0xff]
        %v481 = vld [vmem:[#allocation2 + $0x40] sm:$0xff]
        %v482 = vld [vmem:[#allocation2 + $0x48] sm:$0xff]
        %v483 = vld [vmem:[#allocation2 + $0x50] sm:$0xff]
        %v484 = vld [vmem:[#allocation2 + $0x58] sm:$0xff]
        %v485 = vld [vmem:[#allocation2 + $0x60] sm:$0xff]
        %v486 = vld [vmem:[#allocation2 + $0x68] sm:$0xff]
        %v487 = vld [vmem:[#allocation2 + $0x70] sm:$0xff]
        %v488 = vld [vmem:[#allocation2 + $0x78] sm:$0xff]
        %v489 = vld [vmem:[%s2] sm:$0x1]
        %v491 = vlaneseq
        %v492 = vshrl.u32 %v491, 7
        %v493 = vsub.s32 0, %v492
        %v494 = vrot.slane %v489, %v493
        %v496 = vadd.f32 %v473, %v494
        %v497 = vadd.f32 %v474, %v494
        %v498 = vadd.f32 %v475, %v494
        %v499 = vadd.f32 %v476, %v494
        %v500 = vadd.f32 %v477, %v494
        %v501 = vadd.f32 %v478, %v494
        %v502 = vadd.f32 %v479, %v494
        %v503 = vadd.f32 %v480, %v494
        %v504 = vadd.f32 %v481, %v494
        %v505 = vadd.f32 %v482, %v494
        %v506 = vadd.f32 %v483, %v494
        %v507 = vadd.f32 %v484, %v494
        %v508 = vadd.f32 %v485, %v494
        %v509 = vadd.f32 %v486, %v494
        %v510 = vadd.f32 %v487, %v494
        %v511 = vadd.f32 %v488, %v494
        %v512 = vmax.f32 %v496, 0.0
        %v513 = vmax.f32 %v497, 0.0
        %v514 = vmax.f32 %v498, 0.0
        %v515 = vmax.f32 %v499, 0.0
        %v516 = vmax.f32 %v500, 0.0
        %v517 = vmax.f32 %v501, 0.0
        %v518 = vmax.f32 %v502, 0.0
        %v519 = vmax.f32 %v503, 0.0
        %v520 = vmax.f32 %v504, 0.0
        %v521 = vmax.f32 %v505, 0.0
        %v522 = vmax.f32 %v506, 0.0
        %v523 = vmax.f32 %v507, 0.0
        %v524 = vmax.f32 %v508, 0.0
        %v525 = vmax.f32 %v509, 0.0
        %v526 = vmax.f32 %v510, 0.0
        %v527 = vmax.f32 %v511, 0.0
        %v528 = vpack.c.bf16 %v513, %v512
        %v529 = vpack.c.bf16 %v515, %v514
        %v530 = vpack.c.bf16 %v517, %v516
        %v531 = vpack.c.bf16 %v519, %v518
        %v532 = vpack.c.bf16 %v521, %v520
        %v533 = vpack.c.bf16 %v523, %v522
        %v534 = vpack.c.bf16 %v525, %v524
        %v535 = vpack.c.bf16 %v527, %v526
        %v544 = vunpack.c.l.b16 %v528
        %v545 = vunpack.c.h.b16 %v528
        %v546 = vunpack.c.l.b16 %v529
        %v547 = vunpack.c.h.b16 %v529
        %v548 = vunpack.c.l.b16 %v530
        %v549 = vunpack.c.h.b16 %v530
        %v550 = vunpack.c.l.b16 %v531
        %v551 = vunpack.c.h.b16 %v531
        %v552 = vunpack.c.l.b16 %v532
        %v553 = vunpack.c.h.b16 %v532
        %v554 = vunpack.c.l.b16 %v533
        %v555 = vunpack.c.h.b16 %v533
        %v556 = vunpack.c.l.b16 %v534
        %v557 = vunpack.c.h.b16 %v534
        %v558 = vunpack.c.l.b16 %v535
        %v559 = vunpack.c.h.b16 %v535
        %v560 = vpack.c.b16 %v544, %v544
        %v561 = vpack.c.b16 %v545, %v545
        %v562 = vpack.c.b16 %v546, %v546
        %v563 = vpack.c.b16 %v547, %v547
        %v564 = vpack.c.b16 %v548, %v548
        %v565 = vpack.c.b16 %v549, %v549
        %v566 = vpack.c.b16 %v550, %v550
        %v567 = vpack.c.b16 %v551, %v551
        %v568 = vpack.c.b16 %v552, %v552
        %v569 = vpack.c.b16 %v553, %v553
        %v570 = vpack.c.b16 %v554, %v554
        %v571 = vpack.c.b16 %v555, %v555
        %v572 = vpack.c.b16 %v556, %v556
        %v573 = vpack.c.b16 %v557, %v557
        %v574 = vpack.c.b16 %v558, %v558
        %v575 = vpack.c.b16 %v559, %v559
        %592 = vst [vmem:[%s198] sm:$0xf] %v560
        %593 = vst [vmem:[%s198 + $0x4] sm:$0xf] %v561
        %594 = vst [vmem:[%s198 + $0x8] sm:$0xf] %v562
        %595 = vst [vmem:[%s198 + $0xc] sm:$0xf] %v563
        %596 = vst [vmem:[%s198 + $0x10] sm:$0xf] %v564
        %597 = vst [vmem:[%s198 + $0x14] sm:$0xf] %v565
        %598 = vst [vmem:[%s198 + $0x18] sm:$0xf] %v566
        %599 = vst [vmem:[%s198 + $0x1c] sm:$0xf] %v567
        %600 = vst [vmem:[%s198 + $0x20] sm:$0xf] %v568
        %601 = vst [vmem:[%s198 + $0x24] sm:$0xf] %v569
        %602 = vst [vmem:[%s198 + $0x28] sm:$0xf] %v570
        %603 = vst [vmem:[%s198 + $0x2c] sm:$0xf] %v571
        %604 = vst [vmem:[%s198 + $0x30] sm:$0xf] %v572
        %605 = vst [vmem:[%s198 + $0x34] sm:$0xf] %v573
        %606 = vst [vmem:[%s198 + $0x38] sm:$0xf] %v574
        %607 = vst [vmem:[%s198 + $0x3c] sm:$0xf] %v575
      $region40: #{reduction_b_forward.5} parent=31 // pred_fallthru
        _
      %s608 = smul.u32 16, %s18
      %p609 = scmp.lt.s32.totalorder %s608, 15
      %s610 = scalar_select %p609, %s608, 15
      %s611 = smul.addr %s610, 4
      %s612 = scalar_lea.vmem %s3, %s611
      // Predicated region
      $region41: #{reduction_b_forward.5} parent=31 // pred_check
        %p613 = pneg %p114
      $region42: #{reduction_b_forward.5} parent=31 // pred_check_branch
        %615 = sbr.rel (%p613) target = $region44
      $region43: #{reduction_b_forward.5} parent=31 // pred_region
        %s616 = smul.u32 16, %s18
      $region44: #{reduction_b_forward.5} parent=31 // pred_fallthru
        _
      // Predicated region
      $region45: #{reduction_b_forward.5} parent=31 // pred_check
        %p617 = pneg %p114
      $region46: #{reduction_b_forward.5} parent=31 // pred_check_branch
        %619 = sbr.rel (%p617) target = $region48
      $region47: #{reduction_b_forward.5} parent=31 // pred_region
        %s620 = smul.u32 16, %s18
        %p621 = scmp.lt.s32.totalorder %s620, 15
        %s622 = scalar_select %p621, %s620, 15
        %s623 = smul.addr %s622, 4
        %s624 = scalar_lea.vmem %s3, %s623
      $region48: #{reduction_b_forward.5} parent=31 // pred_fallthru
        _
    $region32: #{reduction_b_forward.5} parent=5 // pred_fallthru
      _
    %p625 = scmp.le.s32.totalorder 2, %s9
    // Predicated region
    $region49: #{reduction_b_forward.5} parent=5 // pred_check
      %p626 = pneg %p625
    $region50: #{reduction_b_forward.5} parent=5 // pred_check_branch
      %628 = sbr.rel (%p626) target = $region52
    $region51: #{reduction_b_forward.5} parent=5 // pred_region
      %s629 = ssub.s32 %s9, 2
    $region52: #{reduction_b_forward.5} parent=5 // pred_fallthru
      _
  $region6: #{reduction_b_forward.5} parent=0 // loop_footer
    %s13 = sadd.s32 1, %s9
  $region7: #{reduction_b_forward.5} parent=0 // loop_footer_branch
    %8 = sbr.rel target = $region3
  $region8: #{reduction_b_forward.5} parent=0 // loop_exit
    _

</llo_original>
